<compile_context>
chip_gen: v5e
topology: v5e:2x2
jax: 0.10.0
libtpu: 0.0.40
codegen_flags: <defaults>
</compile_context>

<pallas_src>
import math
import functools

import jax
import jax.numpy as jnp
from jax.experimental import pallas as pl
from jax.experimental.pallas import tpu as pltpu

_EPS = 1e-5


def _round_up(n, m):
    return ((n + m - 1) // m) * m


def _default_vmem_limit_bytes():
    """~75% of this generation's physical VMEM (v5e/v6e: 128 MiB, v7x: 64 MiB)."""
    cap = 64 * 1024 * 1024
    try:
        info = pltpu.get_tpu_info()
        cap = int(getattr(info, "vmem_capacity_bytes", cap))
    except Exception:
        pass
    return int(cap * 3 // 4)


_VMEM_LIMIT_BYTES = _default_vmem_limit_bytes()


def _layernorm(v, g, b):
    mu = jnp.mean(v, axis=-1, keepdims=True)
    var = jnp.mean(jnp.square(v - mu), axis=-1, keepdims=True)
    return (v - mu) * jax.lax.rsqrt(var + _EPS) * g + b


# ---------------------------------------------------------------------------
# Kernel 1: LayerNorm_1 + QKV in-projection on a (ROW_TILE, D) slab.
# LN math in f32; matmul operands bf16 with f32 accumulation.
# ---------------------------------------------------------------------------
def ln_qkv_kernel(x_ref, g_ref, b_ref, w_qkv_ref, b_qkv_ref, qkv_ref):
    x = x_ref[...]                                     # (R, D) f32
    h = _layernorm(x, g_ref[...], b_ref[...])          # f32 VPU/EUP
    qkv = jnp.dot(h.astype(w_qkv_ref.dtype), w_qkv_ref[...],
                  preferred_element_type=jnp.float32) + b_qkv_ref[...]
    qkv_ref[...] = qkv.astype(qkv_ref.dtype)


# ---------------------------------------------------------------------------
# Kernel 2: multi-head attention over a merged (batch*head) group axis.
# q already carries the 1/sqrt(dh) scale (folded into the weights offline).
# Scores / softmax in f32, MXU operands bf16.
# ---------------------------------------------------------------------------
def attention_kernel(q_ref, k_ref, v_ref, o_ref):
    q = q_ref[...]                                     # (G_TILE, S, dh) bf16
    k = k_ref[...]
    v = v_ref[...]
    s = jnp.einsum("gqd,gkd->gqk", q, k,
                   preferred_element_type=jnp.float32)      # (G_TILE, S, S) f32
    m = jnp.max(s, axis=-1, keepdims=True)
    e = jnp.exp(s - m)
    denom = jnp.sum(e, axis=-1, keepdims=True)
    p = e * pl.reciprocal(denom, approx=True)                # EUP divide
    ctx = jnp.einsum("gqk,gkd->gqd", p.astype(v.dtype), v,
                     preferred_element_type=jnp.float32)     # (G_TILE, S, dh)
    o_ref[...] = ctx.astype(o_ref.dtype)


# ---------------------------------------------------------------------------
# Kernel 3: out-projection + residual + LayerNorm_2 + MLP(quick-GELU) +
# residual on a (ROW_TILE, D) slab.  Elementwise math f32, MXU operands bf16.
# ---------------------------------------------------------------------------
def out_mlp_kernel(ctx_ref, x_ref, w_out_ref, b_out_ref, g2_ref, b2_ref,
                   w_fc1_ref, b_fc1_ref, w_fc2_ref, b_fc2_ref, o_ref):
    ctx = ctx_ref[...]                                 # (R, D) bf16
    x = x_ref[...]                                     # (R, D) f32 residual
    attn = jnp.dot(ctx, w_out_ref[...],
                   preferred_element_type=jnp.float32) + b_out_ref[...]
    x1 = attn + x
    h = _layernorm(x1, g2_ref[...], b2_ref[...])
    f = jnp.dot(h.astype(w_fc1_ref.dtype), w_fc1_ref[...],
                preferred_element_type=jnp.float32) + b_fc1_ref[...]
    f = f * jax.nn.sigmoid(1.702 * f)                  # quick GELU (f32)
    y = jnp.dot(f.astype(w_fc2_ref.dtype), w_fc2_ref[...],
                preferred_element_type=jnp.float32) + b_fc2_ref[...]
    o_ref[...] = (y + x1).astype(o_ref.dtype)


# ---------------------------------------------------------------------------
# Spec / tiling helpers.
# ---------------------------------------------------------------------------
def _const_spec(shape, single_buffer):
    """BlockSpec for a grid-invariant operand; single-buffered when supported."""
    index_map = lambda i: (0,) * len(shape)
    if single_buffer:
        try:
            return pl.BlockSpec(shape, index_map, pipeline_mode=pl.Buffered(1))
        except Exception:   # JAX build without pipeline_mode / Buffered
            pass
    return pl.BlockSpec(shape, index_map)


def _pick_group_tile(G, S, dh, vmem_budget_bytes):
    """Largest divisor of G whose per-step attention footprint fits the budget."""
    # (G_TILE, S, S) f32 scores + double-buffered bf16 q/k/v/ctx blocks.
    per_group = 4 * S * S + 4 * 2 * 2 * S * dh
    cap = max(1, vmem_budget_bytes // per_group)
    for c in (128, 64, 32, 16, 8, 4, 2, 1):
        if c <= G and c <= cap and G % c == 0:
            return c
    return 1


# ---------------------------------------------------------------------------
# One-time parameter preparation (OUTSIDE the jitted forward):
#   * fold 1/sqrt(dh) into the q columns of the in-projection (exact),
#   * cast weight matrices to bf16 (biases / LN params stay f32).
# ---------------------------------------------------------------------------
def prepare_params(params, n_head, n_embd):
    D = n_embd
    dh = D // n_head
    scale = 1.0 / math.sqrt(dh)
    p = dict(params)
    p["w_qkv"] = params["w_qkv"].at[:, :D].multiply(scale).astype(jnp.bfloat16)
    p["b_qkv"] = params["b_qkv"].at[:, :D].multiply(scale)
    p["w_out"] = params["w_out"].astype(jnp.bfloat16)
    p["w_fc1"] = params["w_fc1"].astype(jnp.bfloat16)
    p["w_fc2"] = params["w_fc2"].astype(jnp.bfloat16)
    return p


@functools.partial(jax.jit, static_argnames=("n_head", "single_buffer_weights"))
def spectrogram_clip_layer(x, params, n_head, single_buffer_weights=True):
    B, S, D = x.shape
    dh = D // n_head
    rows = B * S
    G = B * n_head

    ROW_TILE = min(512, _round_up(rows, 16))
    rows_p = _round_up(rows, ROW_TILE)
    G_TILE = _pick_group_tile(G, S, dh, _VMEM_LIMIT_BYTES // 2)

    par = pltpu.CompilerParams(dimension_semantics=("parallel",),
                               vmem_limit_bytes=_VMEM_LIMIT_BYTES)

    def row_spec(width):
        return pl.BlockSpec((ROW_TILE, width), lambda i: (i, 0))

    csp = functools.partial(_const_spec, single_buffer=single_buffer_weights)

    x2 = x.reshape(rows, D)
    x2p = jnp.pad(x2, ((0, rows_p - rows), (0, 0))) if rows_p != rows else x2

    # ---- kernel 1: LN1 + QKV projection on row slabs ------------------------
    qkv = pl.pallas_call(
        ln_qkv_kernel,
        out_shape=jax.ShapeDtypeStruct((rows_p, 3 * D), jnp.bfloat16),
        grid=(rows_p // ROW_TILE,),
        in_specs=[
            row_spec(D),
            csp((1, D)), csp((1, D)),           # ln1_g, ln1_b
            csp((D, 3 * D)), csp((1, 3 * D)),   # w_qkv, b_qkv
        ],
        out_specs=row_spec(3 * D),
        compiler_params=par,
    )(x2p, params["ln1_g"], params["ln1_b"], params["w_qkv"], params["b_qkv"])

    # ---- XLA glue: split heads into a merged (B*H, S, dh) batch axis --------
    qkv = qkv[:rows]
    q, k, v = jnp.split(qkv, 3, axis=-1)

    def to_heads(t):
        return (t.reshape(B, S, n_head, dh)
                 .transpose(0, 2, 1, 3)
                 .reshape(G, S, dh))

    qh, kh, vh = to_heads(q), to_heads(k), to_heads(v)

    # ---- kernel 2: batched attention over (batch*head) groups ---------------
    head_spec = pl.BlockSpec((G_TILE, S, dh), lambda i: (i, 0, 0))
    ctx = pl.pallas_call(
        attention_kernel,
        out_shape=jax.ShapeDtypeStruct((G, S, dh), jnp.bfloat16),
        grid=(G // G_TILE,),
        in_specs=[head_spec, head_spec, head_spec],
        out_specs=head_spec,
        compiler_params=par,
    )(qh, kh, vh)

    # ---- XLA glue: merge heads back to (rows, D) -----------------------------
    ctx_rows = (ctx.reshape(B, n_head, S, dh)
                   .transpose(0, 2, 1, 3)
                   .reshape(rows, D))
    ctx_p = (jnp.pad(ctx_rows, ((0, rows_p - rows), (0, 0)))
             if rows_p != rows else ctx_rows)

    # ---- kernel 3: out-proj + residual + LN2 + MLP + residual ----------------
    out = pl.pallas_call(
        out_mlp_kernel,
        out_shape=jax.ShapeDtypeStruct((rows_p, D), x.dtype),
        grid=(rows_p // ROW_TILE,),
        in_specs=[
            row_spec(D),                          # attention ctx (bf16)
            row_spec(D),                          # residual x (f32)
            csp((D, D)), csp((1, D)),             # w_out, b_out
            csp((1, D)), csp((1, D)),             # ln2_g, ln2_b
            csp((D, 4 * D)), csp((1, 4 * D)),     # w_fc1, b_fc1
            csp((4 * D, D)), csp((1, D)),         # w_fc2, b_fc2
        ],
        out_specs=row_spec(D),
        compiler_params=par,
    )(ctx_p, x2p, params["w_out"], params["b_out"],
      params["ln2_g"], params["ln2_b"],
      params["w_fc1"], params["b_fc1"], params["w_fc2"], params["b_fc2"])

    return out[:rows].reshape(B, S, D)


# ---------------------------------------------------------------------------
# Pure-JAX f32 reference mirroring the PyTorch forward pass.
# ---------------------------------------------------------------------------
def reference(x, p, n_head):
    def ln(v, g, b):
        mu = v.mean(-1, keepdims=True)
        var = ((v - mu) ** 2).mean(-1, keepdims=True)
        return (v - mu) / jnp.sqrt(var + _EPS) * g + b

    B, S, D = x.shape
    dh = D // n_head

    residue = x
    h = ln(x, p["ln1_g"], p["ln1_b"])
    qkv = h @ p["w_qkv"] + p["b_qkv"]
    q, k, v = jnp.split(qkv, 3, axis=-1)
    q = q.reshape(B, S, n_head, dh).transpose(0, 2, 1, 3)
    k = k.reshape(B, S, n_head, dh).transpose(0, 2, 1, 3)
    v = v.reshape(B, S, n_head, dh).transpose(0, 2, 1, 3)
    scores = jnp.einsum("bhqd,bhkd->bhqk", q, k) / math.sqrt(dh)
    attn = jax.nn.softmax(scores, axis=-1)
    out = jnp.einsum("bhqk,bhkd->bhqd", attn, v)
    out = out.transpose(0, 2, 1, 3).reshape(B, S, D)
    out = out @ p["w_out"] + p["b_out"]
    x1 = out + residue

    residue2 = x1
    h2 = ln(x1, p["ln2_g"], p["ln2_b"])
    f = h2 @ p["w_fc1"] + p["b_fc1"]
    f = f * jax.nn.sigmoid(1.702 * f)
    f = f @ p["w_fc2"] + p["b_fc2"]
    return f + residue2


def make_params(key, n_embd):
    D = n_embd
    ks = jax.random.split(key, 8)
    scale = 0.05
    p = {
        "ln1_g": 1.0 + scale * jax.random.normal(ks[0], (1, D), jnp.float32),
        "ln1_b": scale * jax.random.normal(ks[1], (1, D), jnp.float32),
        "w_qkv": scale * jax.random.normal(ks[2], (D, 3 * D), jnp.float32),
        "b_qkv": scale * jax.random.normal(ks[3], (1, 3 * D), jnp.float32),
        "w_out": scale * jax.random.normal(ks[4], (D, D), jnp.float32),
        "b_out": scale * jax.random.normal(ks[5], (1, D), jnp.float32),
        "ln2_g": 1.0 + scale * jax.random.normal(ks[6], (1, D), jnp.float32),
        "ln2_b": scale * jax.random.normal(ks[7], (1, D), jnp.float32),
    }
    ks2 = jax.random.split(jax.random.fold_in(key, 1), 4)
    p["w_fc1"] = scale * jax.random.normal(ks2[0], (D, 4 * D), jnp.float32)
    p["b_fc1"] = scale * jax.random.normal(ks2[1], (1, 4 * D), jnp.float32)
    p["w_fc2"] = scale * jax.random.normal(ks2[2], (4 * D, D), jnp.float32)
    p["b_fc2"] = scale * jax.random.normal(ks2[3], (1, D), jnp.float32)
    return p


if __name__ == "__main__":
    B, S, D, H = 2, 8, 32, 4     # batch, seq, n_embd, n_head (d_head = 8)
    key = jax.random.PRNGKey(0)
    kx, kp = jax.random.split(key)
    x = jax.random.normal(kx, (B, S, D), jnp.float32)
    raw_params = make_params(kp, D)
    params = prepare_params(raw_params, n_head=H, n_embd=D)   # one-time prep

    try:
        out = jax.block_until_ready(
            spectrogram_clip_layer(x, params, n_head=H,
                                   single_buffer_weights=True))
    except Exception:
        # This JAX build rejects pl.Buffered(1) single-buffering; retry with
        # default double-buffered weight specs (semantics unchanged).
        out = jax.block_until_ready(
            spectrogram_clip_layer(x, params, n_head=H,
                                   single_buffer_weights=False))

    ref = reference(x, raw_params, H)
    assert out.shape == (B, S, D)
    # Tolerance covers bf16 MXU operands (f32 accumulation) and the EUP
    # approximate reciprocal used in the softmax.
    err = jnp.max(jnp.abs(out - ref))
    assert jnp.allclose(out, ref, atol=2e-2, rtol=2e-2), f"max abs diff = {err}"
    print("KERNEL_OK")
</pallas_src>

<mosaic_0001>
module attributes {stable_mosaic.version = 11 : i64} {
  func.func @ln_qkv_kernel(%arg0: i32, %arg1: memref<16x32xf32, #tpu.memory_space<vmem>>, %arg2: memref<1x32xf32, #tpu.memory_space<vmem>>, %arg3: memref<1x32xf32, #tpu.memory_space<vmem>>, %arg4: memref<32x96xbf16, #tpu.memory_space<vmem>>, %arg5: memref<1x96xf32, #tpu.memory_space<vmem>>, %arg6: memref<16x96xbf16, #tpu.memory_space<vmem>>) attributes {dimension_semantics = [#tpu.dimension_semantics<parallel>], iteration_bounds = array<i64: 1>, scalar_prefetch = 0 : i64, scratch_operands = 0 : i64, tpu.core_type = #tpu.core_type<tc>, window_params = [{transform_indices = @transform_0, window_bounds = array<i64: 16, 32>}, {pipeline_mode = #tpu.pipeline_mode<synchronous>, transform_indices = @transform_1, window_bounds = array<i64: 1, 32>}, {pipeline_mode = #tpu.pipeline_mode<synchronous>, transform_indices = @transform_2, window_bounds = array<i64: 1, 32>}, {pipeline_mode = #tpu.pipeline_mode<synchronous>, transform_indices = @transform_3, window_bounds = array<i64: 32, 96>}, {pipeline_mode = #tpu.pipeline_mode<synchronous>, transform_indices = @transform_4, window_bounds = array<i64: 1, 96>}, {transform_indices = @transform_5, window_bounds = array<i64: 16, 96>}]} {
    %c0 = arith.constant 0 : index
    %c0_0 = arith.constant 0 : index
    %0 = vector.load %arg1[%c0, %c0_0] : memref<16x32xf32, #tpu.memory_space<vmem>>, vector<16x32xf32>
    %c0_1 = arith.constant 0 : index
    %c0_2 = arith.constant 0 : index
    %1 = vector.load %arg2[%c0_1, %c0_2] : memref<1x32xf32, #tpu.memory_space<vmem>>, vector<1x32xf32>
    %c0_3 = arith.constant 0 : index
    %c0_4 = arith.constant 0 : index
    %2 = vector.load %arg3[%c0_3, %c0_4] : memref<1x32xf32, #tpu.memory_space<vmem>>, vector<1x32xf32>
    %cst = arith.constant dense<0.000000e+00> : vector<16xf32>
    %3 = vector.multi_reduction <add>, %0, %cst [1] : vector<16x32xf32> to vector<16xf32>
    %4 = vector.shape_cast %3 : vector<16xf32> to vector<16x1xf32>
    %cst_5 = arith.constant 3.200000e+01 : f32
    %5 = vector.broadcast %cst_5 : f32 to vector<16x1xf32>
    %6 = arith.divf %4, %5 : vector<16x1xf32>
    %7 = vector.broadcast %6 : vector<16x1xf32> to vector<16x32xf32>
    %8 = arith.subf %0, %7 : vector<16x32xf32>
    %9 = arith.mulf %8, %8 : vector<16x32xf32>
    %cst_6 = arith.constant dense<0.000000e+00> : vector<16xf32>
    %10 = vector.multi_reduction <add>, %9, %cst_6 [1] : vector<16x32xf32> to vector<16xf32>
    %11 = vector.shape_cast %10 : vector<16xf32> to vector<16x1xf32>
    %cst_7 = arith.constant 3.200000e+01 : f32
    %12 = vector.broadcast %cst_7 : f32 to vector<16x1xf32>
    %13 = arith.divf %11, %12 : vector<16x1xf32>
    %14 = vector.broadcast %6 : vector<16x1xf32> to vector<16x32xf32>
    %15 = arith.subf %0, %14 : vector<16x32xf32>
    %cst_8 = arith.constant 9.99999974E-6 : f32
    %16 = vector.broadcast %cst_8 : f32 to vector<16x1xf32>
    %17 = arith.addf %13, %16 : vector<16x1xf32>
    %18 = math.rsqrt %17 : vector<16x1xf32>
    %19 = vector.broadcast %18 : vector<16x1xf32> to vector<16x32xf32>
    %20 = arith.mulf %15, %19 : vector<16x32xf32>
    %21 = vector.broadcast %1 : vector<1x32xf32> to vector<16x32xf32>
    %22 = arith.mulf %20, %21 : vector<16x32xf32>
    %23 = vector.broadcast %2 : vector<1x32xf32> to vector<16x32xf32>
    %24 = arith.addf %22, %23 : vector<16x32xf32>
    %25 = arith.truncf %24 : vector<16x32xf32> to vector<16x32xbf16>
    %c0_9 = arith.constant 0 : index
    %c0_10 = arith.constant 0 : index
    %26 = vector.load %arg4[%c0_9, %c0_10] : memref<32x96xbf16, #tpu.memory_space<vmem>>, vector<32x96xbf16>
    %cst_11 = arith.constant dense<0.000000e+00> : vector<16x96xf32>
    %27 = tpu.matmul %25, %26, %cst_11 {dimension_numbers = #tpu.dot_dimension_numbers<[1], [0], [0], [1], [0, 0, 1, 1], [], []>} : vector<16x32xbf16>, vector<32x96xbf16>, vector<16x96xf32> -> vector<16x96xf32>
    %c0_12 = arith.constant 0 : index
    %c0_13 = arith.constant 0 : index
    %28 = vector.load %arg5[%c0_12, %c0_13] : memref<1x96xf32, #tpu.memory_space<vmem>>, vector<1x96xf32>
    %29 = vector.broadcast %28 : vector<1x96xf32> to vector<16x96xf32>
    %30 = arith.addf %27, %29 : vector<16x96xf32>
    %31 = arith.truncf %30 : vector<16x96xf32> to vector<16x96xbf16>
    %c0_14 = arith.constant 0 : index
    %c0_15 = arith.constant 0 : index
    %32 = vector.load %arg6[%c0_14, %c0_15] : memref<16x96xbf16, #tpu.memory_space<vmem>>, vector<16x96xbf16>
    tpu.vector_store %arg6[%c0_14, %c0_15], %31 {strides = array<i32>} : memref<16x96xbf16, #tpu.memory_space<vmem>>, vector<16x96xbf16>,
    return
  }
  func.func @transform_0(%arg0: i32) -> (i32, i32) {
    %c0_i32 = arith.constant 0 : i32
    %c0_i32_0 = arith.constant 0 : i32
    return %arg0, %c0_i32 : i32, i32
  }
  func.func @transform_1(%arg0: i32) -> (i32, i32) {
    %c0_i32 = arith.constant 0 : i32
    %c0_i32_0 = arith.constant 0 : i32
    %c0_i32_1 = arith.constant 0 : i32
    return %c0_i32, %c0_i32_0 : i32, i32
  }
  func.func @transform_2(%arg0: i32) -> (i32, i32) {
    %c0_i32 = arith.constant 0 : i32
    %c0_i32_0 = arith.constant 0 : i32
    %c0_i32_1 = arith.constant 0 : i32
    return %c0_i32, %c0_i32_0 : i32, i32
  }
  func.func @transform_3(%arg0: i32) -> (i32, i32) {
    %c0_i32 = arith.constant 0 : i32
    %c0_i32_0 = arith.constant 0 : i32
    %c0_i32_1 = arith.constant 0 : i32
    return %c0_i32, %c0_i32_0 : i32, i32
  }
  func.func @transform_4(%arg0: i32) -> (i32, i32) {
    %c0_i32 = arith.constant 0 : i32
    %c0_i32_0 = arith.constant 0 : i32
    %c0_i32_1 = arith.constant 0 : i32
    return %c0_i32, %c0_i32_0 : i32, i32
  }
  func.func @transform_5(%arg0: i32) -> (i32, i32) {
    %c0_i32 = arith.constant 0 : i32
    %c0_i32_0 = arith.constant 0 : i32
    return %arg0, %c0_i32 : i32, i32
  }
}

module attributes {stable_mosaic.version = 11 : i64} {
  func.func @attention_kernel(%arg0: i32, %arg1: memref<8x8x8xbf16, #tpu.memory_space<vmem>>, %arg2: memref<8x8x8xbf16, #tpu.memory_space<vmem>>, %arg3: memref<8x8x8xbf16, #tpu.memory_space<vmem>>, %arg4: memref<8x8x8xbf16, #tpu.memory_space<vmem>>) attributes {dimension_semantics = [#tpu.dimension_semantics<parallel>], iteration_bounds = array<i64: 1>, scalar_prefetch = 0 : i64, scratch_operands = 0 : i64, tpu.core_type = #tpu.core_type<tc>, window_params = [{transform_indices = @transform_0, window_bounds = array<i64: 8, 8, 8>}, {transform_indices = @transform_1, window_bounds = array<i64: 8, 8, 8>}, {transform_indices = @transform_2, window_bounds = array<i64: 8, 8, 8>}, {transform_indices = @transform_3, window_bounds = array<i64: 8, 8, 8>}]} {
    %c0 = arith.constant 0 : index
    %c0_0 = arith.constant 0 : index
    %c0_1 = arith.constant 0 : index
    %0 = vector.load %arg1[%c0, %c0_0, %c0_1] : memref<8x8x8xbf16, #tpu.memory_space<vmem>>, vector<8x8x8xbf16>
    %c0_2 = arith.constant 0 : index
    %c0_3 = arith.constant 0 : index
    %c0_4 = arith.constant 0 : index
    %1 = vector.load %arg2[%c0_2, %c0_3, %c0_4] : memref<8x8x8xbf16, #tpu.memory_space<vmem>>, vector<8x8x8xbf16>
    %c0_5 = arith.constant 0 : index
    %c0_6 = arith.constant 0 : index
    %c0_7 = arith.constant 0 : index
    %2 = vector.load %arg3[%c0_5, %c0_6, %c0_7] : memref<8x8x8xbf16, #tpu.memory_space<vmem>>, vector<8x8x8xbf16>
    "tpu.trace_start"() <{level = 10 : i32, message = "gqd,gkd->gqk"}> : () -> ()
    %cst = arith.constant dense<0.000000e+00> : vector<8x8x8xf32>
    %3 = tpu.matmul %0, %1, %cst {dimension_numbers = #tpu.dot_dimension_numbers<[2], [2], [1], [1], [0, 0, 0, 1, 1, 1], [0], [0]>} : vector<8x8x8xbf16>, vector<8x8x8xbf16>, vector<8x8x8xf32> -> vector<8x8x8xf32>
    "tpu.trace_stop"() : () -> ()
    %cst_8 = arith.constant dense<0xFF800000> : vector<8x8xf32>
    %4 = vector.multi_reduction <maximumf>, %3, %cst_8 [2] : vector<8x8x8xf32> to vector<8x8xf32>
    %5 = vector.shape_cast %4 : vector<8x8xf32> to vector<8x8x1xf32>
    %6 = vector.broadcast %5 : vector<8x8x1xf32> to vector<8x8x8xf32>
    %7 = arith.subf %3, %6 : vector<8x8x8xf32>
    %8 = math.exp %7 : vector<8x8x8xf32>
    %cst_9 = arith.constant dense<0.000000e+00> : vector<8x8xf32>
    %9 = vector.multi_reduction <add>, %8, %cst_9 [2] : vector<8x8x8xf32> to vector<8x8xf32>
    %10 = vector.shape_cast %9 : vector<8x8xf32> to vector<8x8x1xf32>
    %11 = tpu.reciprocal %10 {approx = true} : vector<8x8x1xf32> -> vector<8x8x1xf32>
    %12 = vector.broadcast %11 : vector<8x8x1xf32> to vector<8x8x8xf32>
    %13 = arith.mulf %8, %12 : vector<8x8x8xf32>
    %14 = arith.truncf %13 : vector<8x8x8xf32> to vector<8x8x8xbf16>
    "tpu.trace_start"() <{level = 10 : i32, message = "gqk,gkd->gqd"}> : () -> ()
    %cst_10 = arith.constant dense<0.000000e+00> : vector<8x8x8xf32>
    %15 = tpu.matmul %14, %2, %cst_10 {dimension_numbers = #tpu.dot_dimension_numbers<[2], [1], [1], [2], [0, 0, 0, 1, 1, 2], [0], [0]>} : vector<8x8x8xbf16>, vector<8x8x8xbf16>, vector<8x8x8xf32> -> vector<8x8x8xf32>
    "tpu.trace_stop"() : () -> ()
    %16 = arith.truncf %15 : vector<8x8x8xf32> to vector<8x8x8xbf16>
    %c0_11 = arith.constant 0 : index
    %c0_12 = arith.constant 0 : index
    %c0_13 = arith.constant 0 : index
    %17 = vector.load %arg4[%c0_11, %c0_12, %c0_13] : memref<8x8x8xbf16, #tpu.memory_space<vmem>>, vector<8x8x8xbf16>
    tpu.vector_store %arg4[%c0_11, %c0_12, %c0_13], %16 {strides = array<i32>} : memref<8x8x8xbf16, #tpu.memory_space<vmem>>, vector<8x8x8xbf16>,
    return
  }
  func.func @transform_0(%arg0: i32) -> (i32, i32, i32) {
    %c0_i32 = arith.constant 0 : i32
    %c0_i32_0 = arith.constant 0 : i32
    %c0_i32_1 = arith.constant 0 : i32
    return %arg0, %c0_i32, %c0_i32_0 : i32, i32, i32
  }
  func.func @transform_1(%arg0: i32) -> (i32, i32, i32) {
    %c0_i32 = arith.constant 0 : i32
    %c0_i32_0 = arith.constant 0 : i32
    %c0_i32_1 = arith.constant 0 : i32
    return %arg0, %c0_i32, %c0_i32_0 : i32, i32, i32
  }
  func.func @transform_2(%arg0: i32) -> (i32, i32, i32) {
    %c0_i32 = arith.constant 0 : i32
    %c0_i32_0 = arith.constant 0 : i32
    %c0_i32_1 = arith.constant 0 : i32
    return %arg0, %c0_i32, %c0_i32_0 : i32, i32, i32
  }
  func.func @transform_3(%arg0: i32) -> (i32, i32, i32) {
    %c0_i32 = arith.constant 0 : i32
    %c0_i32_0 = arith.constant 0 : i32
    %c0_i32_1 = arith.constant 0 : i32
    return %arg0, %c0_i32, %c0_i32_0 : i32, i32, i32
  }
}

module attributes {stable_mosaic.version = 11 : i64} {
  func.func @out_mlp_kernel(%arg0: i32, %arg1: memref<16x32xbf16, #tpu.memory_space<vmem>>, %arg2: memref<16x32xf32, #tpu.memory_space<vmem>>, %arg3: memref<32x32xbf16, #tpu.memory_space<vmem>>, %arg4: memref<1x32xf32, #tpu.memory_space<vmem>>, %arg5: memref<1x32xf32, #tpu.memory_space<vmem>>, %arg6: memref<1x32xf32, #tpu.memory_space<vmem>>, %arg7: memref<32x128xbf16, #tpu.memory_space<vmem>>, %arg8: memref<1x128xf32, #tpu.memory_space<vmem>>, %arg9: memref<128x32xbf16, #tpu.memory_space<vmem>>, %arg10: memref<1x32xf32, #tpu.memory_space<vmem>>, %arg11: memref<16x32xf32, #tpu.memory_space<vmem>>) attributes {dimension_semantics = [#tpu.dimension_semantics<parallel>], iteration_bounds = array<i64: 1>, scalar_prefetch = 0 : i64, scratch_operands = 0 : i64, tpu.core_type = #tpu.core_type<tc>, window_params = [{transform_indices = @transform_0, window_bounds = array<i64: 16, 32>}, {transform_indices = @transform_1, window_bounds = array<i64: 16, 32>}, {pipeline_mode = #tpu.pipeline_mode<synchronous>, transform_indices = @transform_2, window_bounds = array<i64: 32, 32>}, {pipeline_mode = #tpu.pipeline_mode<synchronous>, transform_indices = @transform_3, window_bounds = array<i64: 1, 32>}, {pipeline_mode = #tpu.pipeline_mode<synchronous>, transform_indices = @transform_4, window_bounds = array<i64: 1, 32>}, {pipeline_mode = #tpu.pipeline_mode<synchronous>, transform_indices = @transform_5, window_bounds = array<i64: 1, 32>}, {pipeline_mode = #tpu.pipeline_mode<synchronous>, transform_indices = @transform_6, window_bounds = array<i64: 32, 128>}, {pipeline_mode = #tpu.pipeline_mode<synchronous>, transform_indices = @transform_7, window_bounds = array<i64: 1, 128>}, {pipeline_mode = #tpu.pipeline_mode<synchronous>, transform_indices = @transform_8, window_bounds = array<i64: 128, 32>}, {pipeline_mode = #tpu.pipeline_mode<synchronous>, transform_indices = @transform_9, window_bounds = array<i64: 1, 32>}, {transform_indices = @transform_10, window_bounds = array<i64: 16, 32>}]} {
    %c0 = arith.constant 0 : index
    %c0_0 = arith.constant 0 : index
    %0 = vector.load %arg1[%c0, %c0_0] : memref<16x32xbf16, #tpu.memory_space<vmem>>, vector<16x32xbf16>
    %c0_1 = arith.constant 0 : index
    %c0_2 = arith.constant 0 : index
    %1 = vector.load %arg2[%c0_1, %c0_2] : memref<16x32xf32, #tpu.memory_space<vmem>>, vector<16x32xf32>
    %c0_3 = arith.constant 0 : index
    %c0_4 = arith.constant 0 : index
    %2 = vector.load %arg3[%c0_3, %c0_4] : memref<32x32xbf16, #tpu.memory_space<vmem>>, vector<32x32xbf16>
    %cst = arith.constant dense<0.000000e+00> : vector<16x32xf32>
    %3 = tpu.matmul %0, %2, %cst {dimension_numbers = #tpu.dot_dimension_numbers<[1], [0], [0], [1], [0, 0, 1, 1], [], []>} : vector<16x32xbf16>, vector<32x32xbf16>, vector<16x32xf32> -> vector<16x32xf32>
    %c0_5 = arith.constant 0 : index
    %c0_6 = arith.constant 0 : index
    %4 = vector.load %arg4[%c0_5, %c0_6] : memref<1x32xf32, #tpu.memory_space<vmem>>, vector<1x32xf32>
    %5 = vector.broadcast %4 : vector<1x32xf32> to vector<16x32xf32>
    %6 = arith.addf %3, %5 : vector<16x32xf32>
    %7 = arith.addf %6, %1 : vector<16x32xf32>
    %c0_7 = arith.constant 0 : index
    %c0_8 = arith.constant 0 : index
    %8 = vector.load %arg5[%c0_7, %c0_8] : memref<1x32xf32, #tpu.memory_space<vmem>>, vector<1x32xf32>
    %c0_9 = arith.constant 0 : index
    %c0_10 = arith.constant 0 : index
    %9 = vector.load %arg6[%c0_9, %c0_10] : memref<1x32xf32, #tpu.memory_space<vmem>>, vector<1x32xf32>
    %cst_11 = arith.constant dense<0.000000e+00> : vector<16xf32>
    %10 = vector.multi_reduction <add>, %7, %cst_11 [1] : vector<16x32xf32> to vector<16xf32>
    %11 = vector.shape_cast %10 : vector<16xf32> to vector<16x1xf32>
    %cst_12 = arith.constant 3.200000e+01 : f32
    %12 = vector.broadcast %cst_12 : f32 to vector<16x1xf32>
    %13 = arith.divf %11, %12 : vector<16x1xf32>
    %14 = vector.broadcast %13 : vector<16x1xf32> to vector<16x32xf32>
    %15 = arith.subf %7, %14 : vector<16x32xf32>
    %16 = arith.mulf %15, %15 : vector<16x32xf32>
    %cst_13 = arith.constant dense<0.000000e+00> : vector<16xf32>
    %17 = vector.multi_reduction <add>, %16, %cst_13 [1] : vector<16x32xf32> to vector<16xf32>
    %18 = vector.shape_cast %17 : vector<16xf32> to vector<16x1xf32>
    %cst_14 = arith.constant 3.200000e+01 : f32
    %19 = vector.broadcast %cst_14 : f32 to vector<16x1xf32>
    %20 = arith.divf %18, %19 : vector<16x1xf32>
    %21 = vector.broadcast %13 : vector<16x1xf32> to vector<16x32xf32>
    %22 = arith.subf %7, %21 : vector<16x32xf32>
    %cst_15 = arith.constant 9.99999974E-6 : f32
    %23 = vector.broadcast %cst_15 : f32 to vector<16x1xf32>
    %24 = arith.addf %20, %23 : vector<16x1xf32>
    %25 = math.rsqrt %24 : vector<16x1xf32>
    %26 = vector.broadcast %25 : vector<16x1xf32> to vector<16x32xf32>
    %27 = arith.mulf %22, %26 : vector<16x32xf32>
    %28 = vector.broadcast %8 : vector<1x32xf32> to vector<16x32xf32>
    %29 = arith.mulf %27, %28 : vector<16x32xf32>
    %30 = vector.broadcast %9 : vector<1x32xf32> to vector<16x32xf32>
    %31 = arith.addf %29, %30 : vector<16x32xf32>
    %32 = arith.truncf %31 : vector<16x32xf32> to vector<16x32xbf16>
    %c0_16 = arith.constant 0 : index
    %c0_17 = arith.constant 0 : index
    %33 = vector.load %arg7[%c0_16, %c0_17] : memref<32x128xbf16, #tpu.memory_space<vmem>>, vector<32x128xbf16>
    %cst_18 = arith.constant dense<0.000000e+00> : vector<16x128xf32>
    %34 = tpu.matmul %32, %33, %cst_18 {dimension_numbers = #tpu.dot_dimension_numbers<[1], [0], [0], [1], [0, 0, 1, 1], [], []>} : vector<16x32xbf16>, vector<32x128xbf16>, vector<16x128xf32> -> vector<16x128xf32>
    %c0_19 = arith.constant 0 : index
    %c0_20 = arith.constant 0 : index
    %35 = vector.load %arg8[%c0_19, %c0_20] : memref<1x128xf32, #tpu.memory_space<vmem>>, vector<1x128xf32>
    %36 = vector.broadcast %35 : vector<1x128xf32> to vector<16x128xf32>
    %37 = arith.addf %34, %36 : vector<16x128xf32>
    %cst_21 = arith.constant 1.702000e+00 : f32
    %38 = vector.broadcast %cst_21 : f32 to vector<16x128xf32>
    %39 = arith.mulf %38, %37 : vector<16x128xf32>
    %40 = arith.negf %39 : vector<16x128xf32>
    %41 = math.exp %40 : vector<16x128xf32>
    %cst_22 = arith.constant 1.000000e+00 : f32
    %42 = vector.broadcast %cst_22 : f32 to vector<16x128xf32>
    %43 = arith.addf %42, %41 : vector<16x128xf32>
    %44 = arith.divf %42, %43 : vector<16x128xf32>
    %45 = arith.mulf %37, %44 : vector<16x128xf32>
    %46 = arith.truncf %45 : vector<16x128xf32> to vector<16x128xbf16>
    %c0_23 = arith.constant 0 : index
    %c0_24 = arith.constant 0 : index
    %47 = vector.load %arg9[%c0_23, %c0_24] : memref<128x32xbf16, #tpu.memory_space<vmem>>, vector<128x32xbf16>
    %cst_25 = arith.constant dense<0.000000e+00> : vector<16x32xf32>
    %48 = tpu.matmul %46, %47, %cst_25 {dimension_numbers = #tpu.dot_dimension_numbers<[1], [0], [0], [1], [0, 0, 1, 1], [], []>} : vector<16x128xbf16>, vector<128x32xbf16>, vector<16x32xf32> -> vector<16x32xf32>
    %c0_26 = arith.constant 0 : index
    %c0_27 = arith.constant 0 : index
    %49 = vector.load %arg10[%c0_26, %c0_27] : memref<1x32xf32, #tpu.memory_space<vmem>>, vector<1x32xf32>
    %50 = vector.broadcast %49 : vector<1x32xf32> to vector<16x32xf32>
    %51 = arith.addf %48, %50 : vector<16x32xf32>
    %52 = arith.addf %51, %7 : vector<16x32xf32>
    %c0_28 = arith.constant 0 : index
    %c0_29 = arith.constant 0 : index
    %53 = vector.load %arg11[%c0_28, %c0_29] : memref<16x32xf32, #tpu.memory_space<vmem>>, vector<16x32xf32>
    tpu.vector_store %arg11[%c0_28, %c0_29], %52 {strides = array<i32>} : memref<16x32xf32, #tpu.memory_space<vmem>>, vector<16x32xf32>,
    return
  }
  func.func @transform_0(%arg0: i32) -> (i32, i32) {
    %c0_i32 = arith.constant 0 : i32
    %c0_i32_0 = arith.constant 0 : i32
    return %arg0, %c0_i32 : i32, i32
  }
  func.func @transform_1(%arg0: i32) -> (i32, i32) {
    %c0_i32 = arith.constant 0 : i32
    %c0_i32_0 = arith.constant 0 : i32
    return %arg0, %c0_i32 : i32, i32
  }
  func.func @transform_2(%arg0: i32) -> (i32, i32) {
    %c0_i32 = arith.constant 0 : i32
    %c0_i32_0 = arith.constant 0 : i32
    %c0_i32_1 = arith.constant 0 : i32
    return %c0_i32, %c0_i32_0 : i32, i32
  }
  func.func @transform_3(%arg0: i32) -> (i32, i32) {
    %c0_i32 = arith.constant 0 : i32
    %c0_i32_0 = arith.constant 0 : i32
    %c0_i32_1 = arith.constant 0 : i32
    return %c0_i32, %c0_i32_0 : i32, i32
  }
  func.func @transform_4(%arg0: i32) -> (i32, i32) {
    %c0_i32 = arith.constant 0 : i32
    %c0_i32_0 = arith.constant 0 : i32
    %c0_i32_1 = arith.constant 0 : i32
    return %c0_i32, %c0_i32_0 : i32, i32
  }
  func.func @transform_5(%arg0: i32) -> (i32, i32) {
    %c0_i32 = arith.constant 0 : i32
    %c0_i32_0 = arith.constant 0 : i32
    %c0_i32_1 = arith.constant 0 : i32
    return %c0_i32, %c0_i32_0 : i32, i32
  }
  func.func @transform_6(%arg0: i32) -> (i32, i32) {
    %c0_i32 = arith.constant 0 : i32
    %c0_i32_0 = arith.constant 0 : i32
    %c0_i32_1 = arith.constant 0 : i32
    return %c0_i32, %c0_i32_0 : i32, i32
  }
  func.func @transform_7(%arg0: i32) -> (i32, i32) {
    %c0_i32 = arith.constant 0 : i32
    %c0_i32_0 = arith.constant 0 : i32
    %c0_i32_1 = arith.constant 0 : i32
    return %c0_i32, %c0_i32_0 : i32, i32
  }
  func.func @transform_8(%arg0: i32) -> (i32, i32) {
    %c0_i32 = arith.constant 0 : i32
    %c0_i32_0 = arith.constant 0 : i32
    %c0_i32_1 = arith.constant 0 : i32
    return %c0_i32, %c0_i32_0 : i32, i32
  }
  func.func @transform_9(%arg0: i32) -> (i32, i32) {
    %c0_i32 = arith.constant 0 : i32
    %c0_i32_0 = arith.constant 0 : i32
    %c0_i32_1 = arith.constant 0 : i32
    return %c0_i32, %c0_i32_0 : i32, i32
  }
  func.func @transform_10(%arg0: i32) -> (i32, i32) {
    %c0_i32 = arith.constant 0 : i32
    %c0_i32_0 = arith.constant 0 : i32
    return %arg0, %c0_i32 : i32, i32
  }
}

module attributes {stable_mosaic.version = 11 : i64} {
  func.func @attention_kernel(%arg0: i32, %arg1: memref<8x8x8xbf16, #tpu.memory_space<vmem>>, %arg2: memref<8x8x8xbf16, #tpu.memory_space<vmem>>, %arg3: memref<8x8x8xbf16, #tpu.memory_space<vmem>>, %arg4: memref<8x8x8xbf16, #tpu.memory_space<vmem>>) attributes {dimension_semantics = [#tpu.dimension_semantics<parallel>], iteration_bounds = array<i64: 1>, scalar_prefetch = 0 : i64, scratch_operands = 0 : i64, tpu.core_type = #tpu.core_type<tc>, window_params = [{transform_indices = @transform_0, window_bounds = array<i64: 8, 8, 8>}, {transform_indices = @transform_1, window_bounds = array<i64: 8, 8, 8>}, {transform_indices = @transform_2, window_bounds = array<i64: 8, 8, 8>}, {transform_indices = @transform_3, window_bounds = array<i64: 8, 8, 8>}]} {
    %c0 = arith.constant 0 : index
    %c0_0 = arith.constant 0 : index
    %c0_1 = arith.constant 0 : index
    %0 = vector.load %arg1[%c0, %c0_0, %c0_1] : memref<8x8x8xbf16, #tpu.memory_space<vmem>>, vector<8x8x8xbf16>
    %c0_2 = arith.constant 0 : index
    %c0_3 = arith.constant 0 : index
    %c0_4 = arith.constant 0 : index
    %1 = vector.load %arg2[%c0_2, %c0_3, %c0_4] : memref<8x8x8xbf16, #tpu.memory_space<vmem>>, vector<8x8x8xbf16>
    %c0_5 = arith.constant 0 : index
    %c0_6 = arith.constant 0 : index
    %c0_7 = arith.constant 0 : index
    %2 = vector.load %arg3[%c0_5, %c0_6, %c0_7] : memref<8x8x8xbf16, #tpu.memory_space<vmem>>, vector<8x8x8xbf16>
    "tpu.trace_start"() <{level = 10 : i32, message = "gqd,gkd->gqk"}> : () -> ()
    %cst = arith.constant dense<0.000000e+00> : vector<8x8x8xf32>
    %3 = tpu.matmul %0, %1, %cst {dimension_numbers = #tpu.dot_dimension_numbers<[2], [2], [1], [1], [0, 0, 0, 1, 1, 1], [0], [0]>} : vector<8x8x8xbf16>, vector<8x8x8xbf16>, vector<8x8x8xf32> -> vector<8x8x8xf32>
    "tpu.trace_stop"() : () -> ()
    %cst_8 = arith.constant dense<0xFF800000> : vector<8x8xf32>
    %4 = vector.multi_reduction <maximumf>, %3, %cst_8 [2] : vector<8x8x8xf32> to vector<8x8xf32>
    %5 = vector.shape_cast %4 : vector<8x8xf32> to vector<8x8x1xf32>
    %6 = vector.broadcast %5 : vector<8x8x1xf32> to vector<8x8x8xf32>
    %7 = arith.subf %3, %6 : vector<8x8x8xf32>
    %8 = math.exp %7 : vector<8x8x8xf32>
    %cst_9 = arith.constant dense<0.000000e+00> : vector<8x8xf32>
    %9 = vector.multi_reduction <add>, %8, %cst_9 [2] : vector<8x8x8xf32> to vector<8x8xf32>
    %10 = vector.shape_cast %9 : vector<8x8xf32> to vector<8x8x1xf32>
    %11 = tpu.reciprocal %10 {approx = true} : vector<8x8x1xf32> -> vector<8x8x1xf32>
    %12 = vector.broadcast %11 : vector<8x8x1xf32> to vector<8x8x8xf32>
    %13 = arith.mulf %8, %12 : vector<8x8x8xf32>
    %14 = arith.truncf %13 : vector<8x8x8xf32> to vector<8x8x8xbf16>
    "tpu.trace_start"() <{level = 10 : i32, message = "gqk,gkd->gqd"}> : () -> ()
    %cst_10 = arith.constant dense<0.000000e+00> : vector<8x8x8xf32>
    %15 = tpu.matmul %14, %2, %cst_10 {dimension_numbers = #tpu.dot_dimension_numbers<[2], [1], [1], [2], [0, 0, 0, 1, 1, 2], [0], [0]>} : vector<8x8x8xbf16>, vector<8x8x8xbf16>, vector<8x8x8xf32> -> vector<8x8x8xf32>
    "tpu.trace_stop"() : () -> ()
    %16 = arith.truncf %15 : vector<8x8x8xf32> to vector<8x8x8xbf16>
    %c0_11 = arith.constant 0 : index
    %c0_12 = arith.constant 0 : index
    %c0_13 = arith.constant 0 : index
    %17 = vector.load %arg4[%c0_11, %c0_12, %c0_13] : memref<8x8x8xbf16, #tpu.memory_space<vmem>>, vector<8x8x8xbf16>
    tpu.vector_store %arg4[%c0_11, %c0_12, %c0_13], %16 {strides = array<i32>} : memref<8x8x8xbf16, #tpu.memory_space<vmem>>, vector<8x8x8xbf16>,
    return
  }
  func.func @transform_0(%arg0: i32) -> (i32, i32, i32) {
    %c0_i32 = arith.constant 0 : i32
    %c0_i32_0 = arith.constant 0 : i32
    %c0_i32_1 = arith.constant 0 : i32
    return %arg0, %c0_i32, %c0_i32_0 : i32, i32, i32
  }
  func.func @transform_1(%arg0: i32) -> (i32, i32, i32) {
    %c0_i32 = arith.constant 0 : i32
    %c0_i32_0 = arith.constant 0 : i32
    %c0_i32_1 = arith.constant 0 : i32
    return %arg0, %c0_i32, %c0_i32_0 : i32, i32, i32
  }
  func.func @transform_2(%arg0: i32) -> (i32, i32, i32) {
    %c0_i32 = arith.constant 0 : i32
    %c0_i32_0 = arith.constant 0 : i32
    %c0_i32_1 = arith.constant 0 : i32
    return %arg0, %c0_i32, %c0_i32_0 : i32, i32, i32
  }
  func.func @transform_3(%arg0: i32) -> (i32, i32, i32) {
    %c0_i32 = arith.constant 0 : i32
    %c0_i32_0 = arith.constant 0 : i32
    %c0_i32_1 = arith.constant 0 : i32
    return %arg0, %c0_i32, %c0_i32_0 : i32, i32, i32
  }
}

module attributes {stable_mosaic.version = 11 : i64} {
  func.func @ln_qkv_kernel(%arg0: i32, %arg1: memref<16x32xf32, #tpu.memory_space<vmem>>, %arg2: memref<1x32xf32, #tpu.memory_space<vmem>>, %arg3: memref<1x32xf32, #tpu.memory_space<vmem>>, %arg4: memref<32x96xbf16, #tpu.memory_space<vmem>>, %arg5: memref<1x96xf32, #tpu.memory_space<vmem>>, %arg6: memref<16x96xbf16, #tpu.memory_space<vmem>>) attributes {dimension_semantics = [#tpu.dimension_semantics<parallel>], iteration_bounds = array<i64: 1>, scalar_prefetch = 0 : i64, scratch_operands = 0 : i64, tpu.core_type = #tpu.core_type<tc>, window_params = [{transform_indices = @transform_0, window_bounds = array<i64: 16, 32>}, {pipeline_mode = #tpu.pipeline_mode<synchronous>, transform_indices = @transform_1, window_bounds = array<i64: 1, 32>}, {pipeline_mode = #tpu.pipeline_mode<synchronous>, transform_indices = @transform_2, window_bounds = array<i64: 1, 32>}, {pipeline_mode = #tpu.pipeline_mode<synchronous>, transform_indices = @transform_3, window_bounds = array<i64: 32, 96>}, {pipeline_mode = #tpu.pipeline_mode<synchronous>, transform_indices = @transform_4, window_bounds = array<i64: 1, 96>}, {transform_indices = @transform_5, window_bounds = array<i64: 16, 96>}]} {
    %c0 = arith.constant 0 : index
    %c0_0 = arith.constant 0 : index
    %0 = vector.load %arg1[%c0, %c0_0] : memref<16x32xf32, #tpu.memory_space<vmem>>, vector<16x32xf32>
    %c0_1 = arith.constant 0 : index
    %c0_2 = arith.constant 0 : index
    %1 = vector.load %arg2[%c0_1, %c0_2] : memref<1x32xf32, #tpu.memory_space<vmem>>, vector<1x32xf32>
    %c0_3 = arith.constant 0 : index
    %c0_4 = arith.constant 0 : index
    %2 = vector.load %arg3[%c0_3, %c0_4] : memref<1x32xf32, #tpu.memory_space<vmem>>, vector<1x32xf32>
    %cst = arith.constant dense<0.000000e+00> : vector<16xf32>
    %3 = vector.multi_reduction <add>, %0, %cst [1] : vector<16x32xf32> to vector<16xf32>
    %4 = vector.shape_cast %3 : vector<16xf32> to vector<16x1xf32>
    %cst_5 = arith.constant 3.200000e+01 : f32
    %5 = vector.broadcast %cst_5 : f32 to vector<16x1xf32>
    %6 = arith.divf %4, %5 : vector<16x1xf32>
    %7 = vector.broadcast %6 : vector<16x1xf32> to vector<16x32xf32>
    %8 = arith.subf %0, %7 : vector<16x32xf32>
    %9 = arith.mulf %8, %8 : vector<16x32xf32>
    %cst_6 = arith.constant dense<0.000000e+00> : vector<16xf32>
    %10 = vector.multi_reduction <add>, %9, %cst_6 [1] : vector<16x32xf32> to vector<16xf32>
    %11 = vector.shape_cast %10 : vector<16xf32> to vector<16x1xf32>
    %cst_7 = arith.constant 3.200000e+01 : f32
    %12 = vector.broadcast %cst_7 : f32 to vector<16x1xf32>
    %13 = arith.divf %11, %12 : vector<16x1xf32>
    %14 = vector.broadcast %6 : vector<16x1xf32> to vector<16x32xf32>
    %15 = arith.subf %0, %14 : vector<16x32xf32>
    %cst_8 = arith.constant 9.99999974E-6 : f32
    %16 = vector.broadcast %cst_8 : f32 to vector<16x1xf32>
    %17 = arith.addf %13, %16 : vector<16x1xf32>
    %18 = math.rsqrt %17 : vector<16x1xf32>
    %19 = vector.broadcast %18 : vector<16x1xf32> to vector<16x32xf32>
    %20 = arith.mulf %15, %19 : vector<16x32xf32>
    %21 = vector.broadcast %1 : vector<1x32xf32> to vector<16x32xf32>
    %22 = arith.mulf %20, %21 : vector<16x32xf32>
    %23 = vector.broadcast %2 : vector<1x32xf32> to vector<16x32xf32>
    %24 = arith.addf %22, %23 : vector<16x32xf32>
    %25 = arith.truncf %24 : vector<16x32xf32> to vector<16x32xbf16>
    %c0_9 = arith.constant 0 : index
    %c0_10 = arith.constant 0 : index
    %26 = vector.load %arg4[%c0_9, %c0_10] : memref<32x96xbf16, #tpu.memory_space<vmem>>, vector<32x96xbf16>
    %cst_11 = arith.constant dense<0.000000e+00> : vector<16x96xf32>
    %27 = tpu.matmul %25, %26, %cst_11 {dimension_numbers = #tpu.dot_dimension_numbers<[1], [0], [0], [1], [0, 0, 1, 1], [], []>} : vector<16x32xbf16>, vector<32x96xbf16>, vector<16x96xf32> -> vector<16x96xf32>
    %c0_12 = arith.constant 0 : index
    %c0_13 = arith.constant 0 : index
    %28 = vector.load %arg5[%c0_12, %c0_13] : memref<1x96xf32, #tpu.memory_space<vmem>>, vector<1x96xf32>
    %29 = vector.broadcast %28 : vector<1x96xf32> to vector<16x96xf32>
    %30 = arith.addf %27, %29 : vector<16x96xf32>
    %31 = arith.truncf %30 : vector<16x96xf32> to vector<16x96xbf16>
    %c0_14 = arith.constant 0 : index
    %c0_15 = arith.constant 0 : index
    %32 = vector.load %arg6[%c0_14, %c0_15] : memref<16x96xbf16, #tpu.memory_space<vmem>>, vector<16x96xbf16>
    tpu.vector_store %arg6[%c0_14, %c0_15], %31 {strides = array<i32>} : memref<16x96xbf16, #tpu.memory_space<vmem>>, vector<16x96xbf16>,
    return
  }
  func.func @transform_0(%arg0: i32) -> (i32, i32) {
    %c0_i32 = arith.constant 0 : i32
    %c0_i32_0 = arith.constant 0 : i32
    return %arg0, %c0_i32 : i32, i32
  }
  func.func @transform_1(%arg0: i32) -> (i32, i32) {
    %c0_i32 = arith.constant 0 : i32
    %c0_i32_0 = arith.constant 0 : i32
    %c0_i32_1 = arith.constant 0 : i32
    return %c0_i32, %c0_i32_0 : i32, i32
  }
  func.func @transform_2(%arg0: i32) -> (i32, i32) {
    %c0_i32 = arith.constant 0 : i32
    %c0_i32_0 = arith.constant 0 : i32
    %c0_i32_1 = arith.constant 0 : i32
    return %c0_i32, %c0_i32_0 : i32, i32
  }
  func.func @transform_3(%arg0: i32) -> (i32, i32) {
    %c0_i32 = arith.constant 0 : i32
    %c0_i32_0 = arith.constant 0 : i32
    %c0_i32_1 = arith.constant 0 : i32
    return %c0_i32, %c0_i32_0 : i32, i32
  }
  func.func @transform_4(%arg0: i32) -> (i32, i32) {
    %c0_i32 = arith.constant 0 : i32
    %c0_i32_0 = arith.constant 0 : i32
    %c0_i32_1 = arith.constant 0 : i32
    return %c0_i32, %c0_i32_0 : i32, i32
  }
  func.func @transform_5(%arg0: i32) -> (i32, i32) {
    %c0_i32 = arith.constant 0 : i32
    %c0_i32_0 = arith.constant 0 : i32
    return %arg0, %c0_i32 : i32, i32
  }
}

module attributes {stable_mosaic.version = 11 : i64} {
  func.func @out_mlp_kernel(%arg0: i32, %arg1: memref<16x32xbf16, #tpu.memory_space<vmem>>, %arg2: memref<16x32xf32, #tpu.memory_space<vmem>>, %arg3: memref<32x32xbf16, #tpu.memory_space<vmem>>, %arg4: memref<1x32xf32, #tpu.memory_space<vmem>>, %arg5: memref<1x32xf32, #tpu.memory_space<vmem>>, %arg6: memref<1x32xf32, #tpu.memory_space<vmem>>, %arg7: memref<32x128xbf16, #tpu.memory_space<vmem>>, %arg8: memref<1x128xf32, #tpu.memory_space<vmem>>, %arg9: memref<128x32xbf16, #tpu.memory_space<vmem>>, %arg10: memref<1x32xf32, #tpu.memory_space<vmem>>, %arg11: memref<16x32xf32, #tpu.memory_space<vmem>>) attributes {dimension_semantics = [#tpu.dimension_semantics<parallel>], iteration_bounds = array<i64: 1>, scalar_prefetch = 0 : i64, scratch_operands = 0 : i64, tpu.core_type = #tpu.core_type<tc>, window_params = [{transform_indices = @transform_0, window_bounds = array<i64: 16, 32>}, {transform_indices = @transform_1, window_bounds = array<i64: 16, 32>}, {pipeline_mode = #tpu.pipeline_mode<synchronous>, transform_indices = @transform_2, window_bounds = array<i64: 32, 32>}, {pipeline_mode = #tpu.pipeline_mode<synchronous>, transform_indices = @transform_3, window_bounds = array<i64: 1, 32>}, {pipeline_mode = #tpu.pipeline_mode<synchronous>, transform_indices = @transform_4, window_bounds = array<i64: 1, 32>}, {pipeline_mode = #tpu.pipeline_mode<synchronous>, transform_indices = @transform_5, window_bounds = array<i64: 1, 32>}, {pipeline_mode = #tpu.pipeline_mode<synchronous>, transform_indices = @transform_6, window_bounds = array<i64: 32, 128>}, {pipeline_mode = #tpu.pipeline_mode<synchronous>, transform_indices = @transform_7, window_bounds = array<i64: 1, 128>}, {pipeline_mode = #tpu.pipeline_mode<synchronous>, transform_indices = @transform_8, window_bounds = array<i64: 128, 32>}, {pipeline_mode = #tpu.pipeline_mode<synchronous>, transform_indices = @transform_9, window_bounds = array<i64: 1, 32>}, {transform_indices = @transform_10, window_bounds = array<i64: 16, 32>}]} {
    %c0 = arith.constant 0 : index
    %c0_0 = arith.constant 0 : index
    %0 = vector.load %arg1[%c0, %c0_0] : memref<16x32xbf16, #tpu.memory_space<vmem>>, vector<16x32xbf16>
    %c0_1 = arith.constant 0 : index
    %c0_2 = arith.constant 0 : index
    %1 = vector.load %arg2[%c0_1, %c0_2] : memref<16x32xf32, #tpu.memory_space<vmem>>, vector<16x32xf32>
    %c0_3 = arith.constant 0 : index
    %c0_4 = arith.constant 0 : index
    %2 = vector.load %arg3[%c0_3, %c0_4] : memref<32x32xbf16, #tpu.memory_space<vmem>>, vector<32x32xbf16>
    %cst = arith.constant dense<0.000000e+00> : vector<16x32xf32>
    %3 = tpu.matmul %0, %2, %cst {dimension_numbers = #tpu.dot_dimension_numbers<[1], [0], [0], [1], [0, 0, 1, 1], [], []>} : vector<16x32xbf16>, vector<32x32xbf16>, vector<16x32xf32> -> vector<16x32xf32>
    %c0_5 = arith.constant 0 : index
    %c0_6 = arith.constant 0 : index
    %4 = vector.load %arg4[%c0_5, %c0_6] : memref<1x32xf32, #tpu.memory_space<vmem>>, vector<1x32xf32>
    %5 = vector.broadcast %4 : vector<1x32xf32> to vector<16x32xf32>
    %6 = arith.addf %3, %5 : vector<16x32xf32>
    %7 = arith.addf %6, %1 : vector<16x32xf32>
    %c0_7 = arith.constant 0 : index
    %c0_8 = arith.constant 0 : index
    %8 = vector.load %arg5[%c0_7, %c0_8] : memref<1x32xf32, #tpu.memory_space<vmem>>, vector<1x32xf32>
    %c0_9 = arith.constant 0 : index
    %c0_10 = arith.constant 0 : index
    %9 = vector.load %arg6[%c0_9, %c0_10] : memref<1x32xf32, #tpu.memory_space<vmem>>, vector<1x32xf32>
    %cst_11 = arith.constant dense<0.000000e+00> : vector<16xf32>
    %10 = vector.multi_reduction <add>, %7, %cst_11 [1] : vector<16x32xf32> to vector<16xf32>
    %11 = vector.shape_cast %10 : vector<16xf32> to vector<16x1xf32>
    %cst_12 = arith.constant 3.200000e+01 : f32
    %12 = vector.broadcast %cst_12 : f32 to vector<16x1xf32>
    %13 = arith.divf %11, %12 : vector<16x1xf32>
    %14 = vector.broadcast %13 : vector<16x1xf32> to vector<16x32xf32>
    %15 = arith.subf %7, %14 : vector<16x32xf32>
    %16 = arith.mulf %15, %15 : vector<16x32xf32>
    %cst_13 = arith.constant dense<0.000000e+00> : vector<16xf32>
    %17 = vector.multi_reduction <add>, %16, %cst_13 [1] : vector<16x32xf32> to vector<16xf32>
    %18 = vector.shape_cast %17 : vector<16xf32> to vector<16x1xf32>
    %cst_14 = arith.constant 3.200000e+01 : f32
    %19 = vector.broadcast %cst_14 : f32 to vector<16x1xf32>
    %20 = arith.divf %18, %19 : vector<16x1xf32>
    %21 = vector.broadcast %13 : vector<16x1xf32> to vector<16x32xf32>
    %22 = arith.subf %7, %21 : vector<16x32xf32>
    %cst_15 = arith.constant 9.99999974E-6 : f32
    %23 = vector.broadcast %cst_15 : f32 to vector<16x1xf32>
    %24 = arith.addf %20, %23 : vector<16x1xf32>
    %25 = math.rsqrt %24 : vector<16x1xf32>
    %26 = vector.broadcast %25 : vector<16x1xf32> to vector<16x32xf32>
    %27 = arith.mulf %22, %26 : vector<16x32xf32>
    %28 = vector.broadcast %8 : vector<1x32xf32> to vector<16x32xf32>
    %29 = arith.mulf %27, %28 : vector<16x32xf32>
    %30 = vector.broadcast %9 : vector<1x32xf32> to vector<16x32xf32>
    %31 = arith.addf %29, %30 : vector<16x32xf32>
    %32 = arith.truncf %31 : vector<16x32xf32> to vector<16x32xbf16>
    %c0_16 = arith.constant 0 : index
    %c0_17 = arith.constant 0 : index
    %33 = vector.load %arg7[%c0_16, %c0_17] : memref<32x128xbf16, #tpu.memory_space<vmem>>, vector<32x128xbf16>
    %cst_18 = arith.constant dense<0.000000e+00> : vector<16x128xf32>
    %34 = tpu.matmul %32, %33, %cst_18 {dimension_numbers = #tpu.dot_dimension_numbers<[1], [0], [0], [1], [0, 0, 1, 1], [], []>} : vector<16x32xbf16>, vector<32x128xbf16>, vector<16x128xf32> -> vector<16x128xf32>
    %c0_19 = arith.constant 0 : index
    %c0_20 = arith.constant 0 : index
    %35 = vector.load %arg8[%c0_19, %c0_20] : memref<1x128xf32, #tpu.memory_space<vmem>>, vector<1x128xf32>
    %36 = vector.broadcast %35 : vector<1x128xf32> to vector<16x128xf32>
    %37 = arith.addf %34, %36 : vector<16x128xf32>
    %cst_21 = arith.constant 1.702000e+00 : f32
    %38 = vector.broadcast %cst_21 : f32 to vector<16x128xf32>
    %39 = arith.mulf %38, %37 : vector<16x128xf32>
    %40 = arith.negf %39 : vector<16x128xf32>
    %41 = math.exp %40 : vector<16x128xf32>
    %cst_22 = arith.constant 1.000000e+00 : f32
    %42 = vector.broadcast %cst_22 : f32 to vector<16x128xf32>
    %43 = arith.addf %42, %41 : vector<16x128xf32>
    %44 = arith.divf %42, %43 : vector<16x128xf32>
    %45 = arith.mulf %37, %44 : vector<16x128xf32>
    %46 = arith.truncf %45 : vector<16x128xf32> to vector<16x128xbf16>
    %c0_23 = arith.constant 0 : index
    %c0_24 = arith.constant 0 : index
    %47 = vector.load %arg9[%c0_23, %c0_24] : memref<128x32xbf16, #tpu.memory_space<vmem>>, vector<128x32xbf16>
    %cst_25 = arith.constant dense<0.000000e+00> : vector<16x32xf32>
    %48 = tpu.matmul %46, %47, %cst_25 {dimension_numbers = #tpu.dot_dimension_numbers<[1], [0], [0], [1], [0, 0, 1, 1], [], []>} : vector<16x128xbf16>, vector<128x32xbf16>, vector<16x32xf32> -> vector<16x32xf32>
    %c0_26 = arith.constant 0 : index
    %c0_27 = arith.constant 0 : index
    %49 = vector.load %arg10[%c0_26, %c0_27] : memref<1x32xf32, #tpu.memory_space<vmem>>, vector<1x32xf32>
    %50 = vector.broadcast %49 : vector<1x32xf32> to vector<16x32xf32>
    %51 = arith.addf %48, %50 : vector<16x32xf32>
    %52 = arith.addf %51, %7 : vector<16x32xf32>
    %c0_28 = arith.constant 0 : index
    %c0_29 = arith.constant 0 : index
    %53 = vector.load %arg11[%c0_28, %c0_29] : memref<16x32xf32, #tpu.memory_space<vmem>>, vector<16x32xf32>
    tpu.vector_store %arg11[%c0_28, %c0_29], %52 {strides = array<i32>} : memref<16x32xf32, #tpu.memory_space<vmem>>, vector<16x32xf32>,
    return
  }
  func.func @transform_0(%arg0: i32) -> (i32, i32) {
    %c0_i32 = arith.constant 0 : i32
    %c0_i32_0 = arith.constant 0 : i32
    return %arg0, %c0_i32 : i32, i32
  }
  func.func @transform_1(%arg0: i32) -> (i32, i32) {
    %c0_i32 = arith.constant 0 : i32
    %c0_i32_0 = arith.constant 0 : i32
    return %arg0, %c0_i32 : i32, i32
  }
  func.func @transform_2(%arg0: i32) -> (i32, i32) {
    %c0_i32 = arith.constant 0 : i32
    %c0_i32_0 = arith.constant 0 : i32
    %c0_i32_1 = arith.constant 0 : i32
    return %c0_i32, %c0_i32_0 : i32, i32
  }
  func.func @transform_3(%arg0: i32) -> (i32, i32) {
    %c0_i32 = arith.constant 0 : i32
    %c0_i32_0 = arith.constant 0 : i32
    %c0_i32_1 = arith.constant 0 : i32
    return %c0_i32, %c0_i32_0 : i32, i32
  }
  func.func @transform_4(%arg0: i32) -> (i32, i32) {
    %c0_i32 = arith.constant 0 : i32
    %c0_i32_0 = arith.constant 0 : i32
    %c0_i32_1 = arith.constant 0 : i32
    return %c0_i32, %c0_i32_0 : i32, i32
  }
  func.func @transform_5(%arg0: i32) -> (i32, i32) {
    %c0_i32 = arith.constant 0 : i32
    %c0_i32_0 = arith.constant 0 : i32
    %c0_i32_1 = arith.constant 0 : i32
    return %c0_i32, %c0_i32_0 : i32, i32
  }
  func.func @transform_6(%arg0: i32) -> (i32, i32) {
    %c0_i32 = arith.constant 0 : i32
    %c0_i32_0 = arith.constant 0 : i32
    %c0_i32_1 = arith.constant 0 : i32
    return %c0_i32, %c0_i32_0 : i32, i32
  }
  func.func @transform_7(%arg0: i32) -> (i32, i32) {
    %c0_i32 = arith.constant 0 : i32
    %c0_i32_0 = arith.constant 0 : i32
    %c0_i32_1 = arith.constant 0 : i32
    return %c0_i32, %c0_i32_0 : i32, i32
  }
  func.func @transform_8(%arg0: i32) -> (i32, i32) {
    %c0_i32 = arith.constant 0 : i32
    %c0_i32_0 = arith.constant 0 : i32
    %c0_i32_1 = arith.constant 0 : i32
    return %c0_i32, %c0_i32_0 : i32, i32
  }
  func.func @transform_9(%arg0: i32) -> (i32, i32) {
    %c0_i32 = arith.constant 0 : i32
    %c0_i32_0 = arith.constant 0 : i32
    %c0_i32_1 = arith.constant 0 : i32
    return %c0_i32, %c0_i32_0 : i32, i32
  }
  func.func @transform_10(%arg0: i32) -> (i32, i32) {
    %c0_i32 = arith.constant 0 : i32
    %c0_i32_0 = arith.constant 0 : i32
    return %arg0, %c0_i32 : i32, i32
  }
}

</mosaic_0001>

<llo_original>
// kernel: spectrogram_clip_layer.4
$region0: #{spectrogram_clip_layer.4}
  #allocation0 [shape = 'u32[]', space=smem, size = 0x4, offset = 0x4, fixed_abs, tag = 'smem constant byte address 0x4 - core index']
  #allocation1 [shape = 'u32[72,128]{1,0:T(1,128)}', space=vmem, size = 0x9000, scoped, tag = 'internal scratch']
  %s0 = inlined_call_operand.vmem [shape: bf16[8,8,8], index: 0, kind: input, shape index: {}]
  %s1 = inlined_call_operand.vmem [shape: bf16[8,8,8], index: 1, kind: input, shape index: {}]
  %s2 = inlined_call_operand.vmem [shape: bf16[8,8,8], index: 2, kind: input, shape index: {}]
  %s3 = inlined_call_operand.vmem [shape: bf16[8,8,8], index: 3, kind: output, shape index: {}]
  %s4 = sld [smem:[#allocation0]]
  $region22: #{spectrogram_clip_layer.4} parent=0
    _
  %s6 = ssub.s32 1, %s4
  %s7 = scalar_select 0, %s6, %s4
  // Predicated region
  $region2: #{spectrogram_clip_layer.4} parent=0 // pred_check
    _
  $region3: #{spectrogram_clip_layer.4} parent=0 // pred_check_branch
    %9 = sbr.rel (0) target = $region5
  $region4: #{spectrogram_clip_layer.4} parent=0 // pred_region
    _
  $region5: #{spectrogram_clip_layer.4} parent=0 // pred_fallthru
    _
  // Predicated region
  $region6: #{spectrogram_clip_layer.4} parent=0 // pred_check
    _
  $region7: #{spectrogram_clip_layer.4} parent=0 // pred_check_branch
    %11 = sbr.rel (0) target = $region9
  $region8: #{spectrogram_clip_layer.4} parent=0 // pred_region
    _
  $region9: #{spectrogram_clip_layer.4} parent=0 // pred_fallthru
    _
  // Predicated region
  $region10: #{spectrogram_clip_layer.4} parent=0 // pred_check
    _
  $region11: #{spectrogram_clip_layer.4} parent=0 // pred_check_branch
    %13 = sbr.rel (0) target = $region13
  $region12: #{spectrogram_clip_layer.4} parent=0 // pred_region
    _
  $region13: #{spectrogram_clip_layer.4} parent=0 // pred_fallthru
    _
  %v15 = vld [vmem:[%s0] sm:$0xf]
  %v16 = vld [vmem:[%s0 + $0x4] sm:$0xf]
  %v17 = vld [vmem:[%s0 + $0x8] sm:$0xf]
  %v18 = vld [vmem:[%s0 + $0xc] sm:$0xf]
  %v19 = vld [vmem:[%s0 + $0x10] sm:$0xf]
  %v20 = vld [vmem:[%s0 + $0x14] sm:$0xf]
  %v21 = vld [vmem:[%s0 + $0x18] sm:$0xf]
  %v22 = vld [vmem:[%s0 + $0x1c] sm:$0xf]
  %v23 = vld [vmem:[%s1] sm:$0xf]
  %v24 = vld [vmem:[%s1 + $0x4] sm:$0xf]
  %v25 = vld [vmem:[%s1 + $0x8] sm:$0xf]
  %v26 = vld [vmem:[%s1 + $0xc] sm:$0xf]
  %v27 = vld [vmem:[%s1 + $0x10] sm:$0xf]
  %v28 = vld [vmem:[%s1 + $0x14] sm:$0xf]
  %v29 = vld [vmem:[%s1 + $0x18] sm:$0xf]
  %v30 = vld [vmem:[%s1 + $0x1c] sm:$0xf]
  %v31 = vld [vmem:[%s2] sm:$0xf]
  %v32 = vld [vmem:[%s2 + $0x4] sm:$0xf]
  %v33 = vld [vmem:[%s2 + $0x8] sm:$0xf]
  %v34 = vld [vmem:[%s2 + $0xc] sm:$0xf]
  %v35 = vld [vmem:[%s2 + $0x10] sm:$0xf]
  %v36 = vld [vmem:[%s2 + $0x14] sm:$0xf]
  %v37 = vld [vmem:[%s2 + $0x18] sm:$0xf]
  %v38 = vld [vmem:[%s2 + $0x1c] sm:$0xf]
  %vm39 = vcmask 64512
  %v41 = vsel %vm39, %v15, 0
  %v44 = vsel %vm39, %v23, 0
  %46 = vmatpush.bf16.xpose.msra.mxu0 0
  %47 = vmatpush.bf16.xpose.msra.mxu0 0
  %48 = vmatpush.bf16.xpose.msra.mxu0 0
  %49 = vmatpush.bf16.xpose.msra.mxu0 0
  %50 = vmatpush.bf16.xpose.msra.mxu0 0
  %51 = vmatpush.bf16.xpose.msra.mxu0 0
  %52 = vmatpush.bf16.xpose.msra.mxu0 0
  %53 = vmatpush.bf16.xpose.msra.mxu0 %v44
  %54 = vmatmul.bf16.gmra.mxu0 %v41
  %v55 = vpop.f32.mrf.mxu0
  %v56 = vadd.f32 0.0, %v55
  %v57 = vpop.f32.mrf.mxu0
  %58 = vdwg.mxu0
  %v60 = vsel %vm39, %v16, 0
  %v63 = vsel %vm39, %v24, 0
  %65 = vmatpush.bf16.xpose.msra.mxu0 0
  %66 = vmatpush.bf16.xpose.msra.mxu0 0
  %67 = vmatpush.bf16.xpose.msra.mxu0 0
  %68 = vmatpush.bf16.xpose.msra.mxu0 0
  %69 = vmatpush.bf16.xpose.msra.mxu0 0
  %70 = vmatpush.bf16.xpose.msra.mxu0 0
  %71 = vmatpush.bf16.xpose.msra.mxu0 0
  %72 = vmatpush.bf16.xpose.msra.mxu0 %v63
  %73 = vmatmul.bf16.gmra.mxu0 %v60
  %v74 = vpop.f32.mrf.mxu0
  %v75 = vadd.f32 0.0, %v74
  %v76 = vpop.f32.mrf.mxu0
  %77 = vdwg.mxu0
  %v79 = vsel %vm39, %v17, 0
  %v82 = vsel %vm39, %v25, 0
  %84 = vmatpush.bf16.xpose.msra.mxu0 0
  %85 = vmatpush.bf16.xpose.msra.mxu0 0
  %86 = vmatpush.bf16.xpose.msra.mxu0 0
  %87 = vmatpush.bf16.xpose.msra.mxu0 0
  %88 = vmatpush.bf16.xpose.msra.mxu0 0
  %89 = vmatpush.bf16.xpose.msra.mxu0 0
  %90 = vmatpush.bf16.xpose.msra.mxu0 0
  %91 = vmatpush.bf16.xpose.msra.mxu0 %v82
  %92 = vmatmul.bf16.gmra.mxu0 %v79
  %v93 = vpop.f32.mrf.mxu0
  %v94 = vadd.f32 0.0, %v93
  %v95 = vpop.f32.mrf.mxu0
  %96 = vdwg.mxu0
  %v98 = vsel %vm39, %v18, 0
  %v101 = vsel %vm39, %v26, 0
  %103 = vmatpush.bf16.xpose.msra.mxu0 0
  %104 = vmatpush.bf16.xpose.msra.mxu0 0
  %105 = vmatpush.bf16.xpose.msra.mxu0 0
  %106 = vmatpush.bf16.xpose.msra.mxu0 0
  %107 = vmatpush.bf16.xpose.msra.mxu0 0
  %108 = vmatpush.bf16.xpose.msra.mxu0 0
  %109 = vmatpush.bf16.xpose.msra.mxu0 0
  %110 = vmatpush.bf16.xpose.msra.mxu0 %v101
  %111 = vmatmul.bf16.gmra.mxu0 %v98
  %v112 = vpop.f32.mrf.mxu0
  %v113 = vadd.f32 0.0, %v112
  %v114 = vpop.f32.mrf.mxu0
  %115 = vdwg.mxu0
  %v117 = vsel %vm39, %v19, 0
  %v120 = vsel %vm39, %v27, 0
  %122 = vmatpush.bf16.xpose.msra.mxu0 0
  %123 = vmatpush.bf16.xpose.msra.mxu0 0
  %124 = vmatpush.bf16.xpose.msra.mxu0 0
  %125 = vmatpush.bf16.xpose.msra.mxu0 0
  %126 = vmatpush.bf16.xpose.msra.mxu0 0
  %127 = vmatpush.bf16.xpose.msra.mxu0 0
  %128 = vmatpush.bf16.xpose.msra.mxu0 0
  %129 = vmatpush.bf16.xpose.msra.mxu0 %v120
  %130 = vmatmul.bf16.gmra.mxu0 %v117
  %v131 = vpop.f32.mrf.mxu0
  %v132 = vadd.f32 0.0, %v131
  %v133 = vpop.f32.mrf.mxu0
  %134 = vdwg.mxu0
  %v136 = vsel %vm39, %v20, 0
  %v139 = vsel %vm39, %v28, 0
  %141 = vmatpush.bf16.xpose.msra.mxu0 0
  %142 = vmatpush.bf16.xpose.msra.mxu0 0
  %143 = vmatpush.bf16.xpose.msra.mxu0 0
  %144 = vmatpush.bf16.xpose.msra.mxu0 0
  %145 = vmatpush.bf16.xpose.msra.mxu0 0
  %146 = vmatpush.bf16.xpose.msra.mxu0 0
  %147 = vmatpush.bf16.xpose.msra.mxu0 0
  %148 = vmatpush.bf16.xpose.msra.mxu0 %v139
  %149 = vmatmul.bf16.gmra.mxu0 %v136
  %v150 = vpop.f32.mrf.mxu0
  %v151 = vadd.f32 0.0, %v150
  %v152 = vpop.f32.mrf.mxu0
  %153 = vdwg.mxu0
  %v155 = vsel %vm39, %v21, 0
  %v158 = vsel %vm39, %v29, 0
  %160 = vmatpush.bf16.xpose.msra.mxu0 0
  %161 = vmatpush.bf16.xpose.msra.mxu0 0
  %162 = vmatpush.bf16.xpose.msra.mxu0 0
  %163 = vmatpush.bf16.xpose.msra.mxu0 0
  %164 = vmatpush.bf16.xpose.msra.mxu0 0
  %165 = vmatpush.bf16.xpose.msra.mxu0 0
  %166 = vmatpush.bf16.xpose.msra.mxu0 0
  %167 = vmatpush.bf16.xpose.msra.mxu0 %v158
  %168 = vmatmul.bf16.gmra.mxu0 %v155
  %v169 = vpop.f32.mrf.mxu0
  %v170 = vadd.f32 0.0, %v169
  %v171 = vpop.f32.mrf.mxu0
  %172 = vdwg.mxu0
  %v174 = vsel %vm39, %v22, 0
  %v177 = vsel %vm39, %v30, 0
  %179 = vmatpush.bf16.xpose.msra.mxu0 0
  %180 = vmatpush.bf16.xpose.msra.mxu0 0
  %181 = vmatpush.bf16.xpose.msra.mxu0 0
  %182 = vmatpush.bf16.xpose.msra.mxu0 0
  %183 = vmatpush.bf16.xpose.msra.mxu0 0
  %184 = vmatpush.bf16.xpose.msra.mxu0 0
  %185 = vmatpush.bf16.xpose.msra.mxu0 0
  %186 = vmatpush.bf16.xpose.msra.mxu0 %v177
  %187 = vmatmul.bf16.gmra.mxu0 %v174
  %v188 = vpop.f32.mrf.mxu0
  %v189 = vadd.f32 0.0, %v188
  %v190 = vpop.f32.mrf.mxu0
  %191 = vdwg.mxu0
  %v192 = vsel %vm39, %v56, -inf
  %193 = vmax.xlane.f32.xlu0 %v192
  %v194 = vpop.xlane.xlu0 %193
  %v195 = vsel %vm39, %v75, -inf
  %196 = vmax.xlane.f32.xlu0 %v195
  %v197 = vpop.xlane.xlu0 %196
  %v198 = vsel %vm39, %v94, -inf
  %199 = vmax.xlane.f32.xlu0 %v198
  %v200 = vpop.xlane.xlu0 %199
  %v201 = vsel %vm39, %v113, -inf
  %202 = vmax.xlane.f32.xlu0 %v201
  %v203 = vpop.xlane.xlu0 %202
  %v204 = vsel %vm39, %v132, -inf
  %205 = vmax.xlane.f32.xlu0 %v204
  %v206 = vpop.xlane.xlu0 %205
  %v207 = vsel %vm39, %v151, -inf
  %208 = vmax.xlane.f32.xlu0 %v207
  %v209 = vpop.xlane.xlu0 %208
  %v210 = vsel %vm39, %v170, -inf
  %211 = vmax.xlane.f32.xlu0 %v210
  %v212 = vpop.xlane.xlu0 %211
  %v213 = vsel %vm39, %v189, -inf
  %214 = vmax.xlane.f32.xlu0 %v213
  %v215 = vpop.xlane.xlu0 %214
  %v216 = vsub.f32 %v56, %v194
  %v217 = vsub.f32 %v75, %v197
  %v218 = vsub.f32 %v94, %v200
  %v219 = vsub.f32 %v113, %v203
  %v220 = vsub.f32 %v132, %v206
  %v221 = vsub.f32 %v151, %v209
  %v222 = vsub.f32 %v170, %v212
  %v223 = vsub.f32 %v189, %v215
  %v224 = vmul.f32 %v216, 1.442695
  %v225 = vpow.pop %v224
  %v226 = vmul.f32 %v217, 1.442695
  %v227 = vpow.pop %v226
  %v228 = vmul.f32 %v218, 1.442695
  %v229 = vpow.pop %v228
  %v230 = vmul.f32 %v219, 1.442695
  %v231 = vpow.pop %v230
  %v232 = vmul.f32 %v220, 1.442695
  %v233 = vpow.pop %v232
  %v234 = vmul.f32 %v221, 1.442695
  %v235 = vpow.pop %v234
  %v236 = vmul.f32 %v222, 1.442695
  %v237 = vpow.pop %v236
  %v238 = vmul.f32 %v223, 1.442695
  %v239 = vpow.pop %v238
  %v240 = vsel %vm39, %v225, 0.0
  %241 = vadd.xlane.f32.xlu0 %v240
  %v242 = vpop.xlane.xlu0 %241
  %v243 = vsel %vm39, %v227, 0.0
  %244 = vadd.xlane.f32.xlu0 %v243
  %v245 = vpop.xlane.xlu0 %244
  %v246 = vsel %vm39, %v229, 0.0
  %247 = vadd.xlane.f32.xlu0 %v246
  %v248 = vpop.xlane.xlu0 %247
  %v249 = vsel %vm39, %v231, 0.0
  %250 = vadd.xlane.f32.xlu0 %v249
  %v251 = vpop.xlane.xlu0 %250
  %v252 = vsel %vm39, %v233, 0.0
  %253 = vadd.xlane.f32.xlu0 %v252
  %v254 = vpop.xlane.xlu0 %253
  %v255 = vsel %vm39, %v235, 0.0
  %256 = vadd.xlane.f32.xlu0 %v255
  %v257 = vpop.xlane.xlu0 %256
  %v258 = vsel %vm39, %v237, 0.0
  %259 = vadd.xlane.f32.xlu0 %v258
  %v260 = vpop.xlane.xlu0 %259
  %v261 = vsel %vm39, %v239, 0.0
  %262 = vadd.xlane.f32.xlu0 %v261
  %v263 = vpop.xlane.xlu0 %262
  %v264 = vrcp.pop %v242
  %v265 = vrcp.pop %v245
  %v266 = vrcp.pop %v248
  %v267 = vrcp.pop %v251
  %v268 = vrcp.pop %v254
  %v269 = vrcp.pop %v257
  %v270 = vrcp.pop %v260
  %v271 = vrcp.pop %v263
  %v272 = vmul.f32 %v225, %v264
  %v273 = vmul.f32 %v227, %v265
  %v274 = vmul.f32 %v229, %v266
  %v275 = vmul.f32 %v231, %v267
  %v276 = vmul.f32 %v233, %v268
  %v277 = vmul.f32 %v235, %v269
  %v278 = vmul.f32 %v237, %v270
  %v279 = vmul.f32 %v239, %v271
  %v280 = vpack.c.bf16 %v272, %v272
  %v281 = vpack.c.bf16 %v273, %v273
  %v282 = vpack.c.bf16 %v274, %v274
  %v283 = vpack.c.bf16 %v275, %v275
  %v284 = vpack.c.bf16 %v276, %v276
  %v285 = vpack.c.bf16 %v277, %v277
  %v286 = vpack.c.bf16 %v278, %v278
  %v287 = vpack.c.bf16 %v279, %v279
  %v289 = vsel %vm39, %v280, 0
  %vm291 = vcmask 1043456
  %v293 = vsel %vm291, %v31, 0
  %295 = vmatpush.bf16.msra.mxu0 0
  %296 = vmatpush.bf16.msra.mxu0 0
  %297 = vmatpush.bf16.msra.mxu0 0
  %298 = vmatpush.bf16.msra.mxu0 0
  %299 = vmatpush.bf16.msra.mxu0 0
  %300 = vmatpush.bf16.msra.mxu0 0
  %301 = vmatpush.bf16.msra.mxu0 0
  %302 = vmatpush.bf16.msra.mxu0 %v293
  %303 = vmatmul.bf16.gmra.mxu0 %v289
  %v304 = vpop.f32.mrf.mxu0
  %v305 = vadd.f32 0.0, %v304
  %v306 = vpop.f32.mrf.mxu0
  %307 = vdwg.mxu0
  %v309 = vsel %vm39, %v281, 0
  %v312 = vsel %vm291, %v32, 0
  %314 = vmatpush.bf16.msra.mxu0 0
  %315 = vmatpush.bf16.msra.mxu0 0
  %316 = vmatpush.bf16.msra.mxu0 0
  %317 = vmatpush.bf16.msra.mxu0 0
  %318 = vmatpush.bf16.msra.mxu0 0
  %319 = vmatpush.bf16.msra.mxu0 0
  %320 = vmatpush.bf16.msra.mxu0 0
  %321 = vmatpush.bf16.msra.mxu0 %v312
  %322 = vmatmul.bf16.gmra.mxu0 %v309
  %v323 = vpop.f32.mrf.mxu0
  %v324 = vadd.f32 0.0, %v323
  %v325 = vpop.f32.mrf.mxu0
  %326 = vdwg.mxu0
  %v328 = vsel %vm39, %v282, 0
  %v331 = vsel %vm291, %v33, 0
  %333 = vmatpush.bf16.msra.mxu0 0
  %334 = vmatpush.bf16.msra.mxu0 0
  %335 = vmatpush.bf16.msra.mxu0 0
  %336 = vmatpush.bf16.msra.mxu0 0
  %337 = vmatpush.bf16.msra.mxu0 0
  %338 = vmatpush.bf16.msra.mxu0 0
  %339 = vmatpush.bf16.msra.mxu0 0
  %340 = vmatpush.bf16.msra.mxu0 %v331
  %341 = vmatmul.bf16.gmra.mxu0 %v328
  %v342 = vpop.f32.mrf.mxu0
  %v343 = vadd.f32 0.0, %v342
  %v344 = vpop.f32.mrf.mxu0
  %345 = vdwg.mxu0
  %v347 = vsel %vm39, %v283, 0
  %v350 = vsel %vm291, %v34, 0
  %352 = vmatpush.bf16.msra.mxu0 0
  %353 = vmatpush.bf16.msra.mxu0 0
  %354 = vmatpush.bf16.msra.mxu0 0
  %355 = vmatpush.bf16.msra.mxu0 0
  %356 = vmatpush.bf16.msra.mxu0 0
  %357 = vmatpush.bf16.msra.mxu0 0
  %358 = vmatpush.bf16.msra.mxu0 0
  %359 = vmatpush.bf16.msra.mxu0 %v350
  %360 = vmatmul.bf16.gmra.mxu0 %v347
  %v361 = vpop.f32.mrf.mxu0
  %v362 = vadd.f32 0.0, %v361
  %v363 = vpop.f32.mrf.mxu0
  %364 = vdwg.mxu0
  %v366 = vsel %vm39, %v284, 0
  %v369 = vsel %vm291, %v35, 0
  %371 = vmatpush.bf16.msra.mxu0 0
  %372 = vmatpush.bf16.msra.mxu0 0
  %373 = vmatpush.bf16.msra.mxu0 0
  %374 = vmatpush.bf16.msra.mxu0 0
  %375 = vmatpush.bf16.msra.mxu0 0
  %376 = vmatpush.bf16.msra.mxu0 0
  %377 = vmatpush.bf16.msra.mxu0 0
  %378 = vmatpush.bf16.msra.mxu0 %v369
  %379 = vmatmul.bf16.gmra.mxu0 %v366
  %v380 = vpop.f32.mrf.mxu0
  %v381 = vadd.f32 0.0, %v380
  %v382 = vpop.f32.mrf.mxu0
  %383 = vdwg.mxu0
  %v385 = vsel %vm39, %v285, 0
  %v388 = vsel %vm291, %v36, 0
  %390 = vmatpush.bf16.msra.mxu0 0
  %391 = vmatpush.bf16.msra.mxu0 0
  %392 = vmatpush.bf16.msra.mxu0 0
  %393 = vmatpush.bf16.msra.mxu0 0
  %394 = vmatpush.bf16.msra.mxu0 0
  %395 = vmatpush.bf16.msra.mxu0 0
  %396 = vmatpush.bf16.msra.mxu0 0
  %397 = vmatpush.bf16.msra.mxu0 %v388
  %398 = vmatmul.bf16.gmra.mxu0 %v385
  %v399 = vpop.f32.mrf.mxu0
  %v400 = vadd.f32 0.0, %v399
  %v401 = vpop.f32.mrf.mxu0
  %402 = vdwg.mxu0
  %v404 = vsel %vm39, %v286, 0
  %v407 = vsel %vm291, %v37, 0
  %409 = vmatpush.bf16.msra.mxu0 0
  %410 = vmatpush.bf16.msra.mxu0 0
  %411 = vmatpush.bf16.msra.mxu0 0
  %412 = vmatpush.bf16.msra.mxu0 0
  %413 = vmatpush.bf16.msra.mxu0 0
  %414 = vmatpush.bf16.msra.mxu0 0
  %415 = vmatpush.bf16.msra.mxu0 0
  %416 = vmatpush.bf16.msra.mxu0 %v407
  %417 = vmatmul.bf16.gmra.mxu0 %v404
  %v418 = vpop.f32.mrf.mxu0
  %v419 = vadd.f32 0.0, %v418
  %v420 = vpop.f32.mrf.mxu0
  %421 = vdwg.mxu0
  %v423 = vsel %vm39, %v287, 0
  %v426 = vsel %vm291, %v38, 0
  %428 = vmatpush.bf16.msra.mxu0 0
  %429 = vmatpush.bf16.msra.mxu0 0
  %430 = vmatpush.bf16.msra.mxu0 0
  %431 = vmatpush.bf16.msra.mxu0 0
  %432 = vmatpush.bf16.msra.mxu0 0
  %433 = vmatpush.bf16.msra.mxu0 0
  %434 = vmatpush.bf16.msra.mxu0 0
  %435 = vmatpush.bf16.msra.mxu0 %v426
  %436 = vmatmul.bf16.gmra.mxu0 %v423
  %v437 = vpop.f32.mrf.mxu0
  %v438 = vadd.f32 0.0, %v437
  %v439 = vpop.f32.mrf.mxu0
  %440 = vdwg.mxu0
  %v441 = vpack.c.bf16 %v305, %v305
  %v442 = vpack.c.bf16 %v324, %v324
  %v443 = vpack.c.bf16 %v343, %v343
  %v444 = vpack.c.bf16 %v362, %v362
  %v445 = vpack.c.bf16 %v381, %v381
  %v446 = vpack.c.bf16 %v400, %v400
  %v447 = vpack.c.bf16 %v419, %v419
  %v448 = vpack.c.bf16 %v438, %v438
  %vm449 = vcmask 60416
  %450 = vst.msk [vmem:[%s3] sm:$0xf] %vm449, %v441
  %451 = vst.msk [vmem:[%s3 + $0x4] sm:$0xf] %vm449, %v442
  %452 = vst.msk [vmem:[%s3 + $0x8] sm:$0xf] %vm449, %v443
  %453 = vst.msk [vmem:[%s3 + $0xc] sm:$0xf] %vm449, %v444
  %454 = vst.msk [vmem:[%s3 + $0x10] sm:$0xf] %vm449, %v445
  %455 = vst.msk [vmem:[%s3 + $0x14] sm:$0xf] %vm449, %v446
  %456 = vst.msk [vmem:[%s3 + $0x18] sm:$0xf] %vm449, %v447
  %457 = vst.msk [vmem:[%s3 + $0x1c] sm:$0xf] %vm449, %v448
  // Predicated region
  $region14: #{spectrogram_clip_layer.4} parent=0 // pred_check
    _
  $region15: #{spectrogram_clip_layer.4} parent=0 // pred_check_branch
    %459 = sbr.rel (0) target = $region17
  $region16: #{spectrogram_clip_layer.4} parent=0 // pred_region
    _
  $region17: #{spectrogram_clip_layer.4} parent=0 // pred_fallthru
    _
  // Predicated region
  $region18: #{spectrogram_clip_layer.4} parent=0 // pred_check
    _
  $region19: #{spectrogram_clip_layer.4} parent=0 // pred_check_branch
    %461 = sbr.rel (0) target = $region21
  $region20: #{spectrogram_clip_layer.4} parent=0 // pred_region
    _
  $region21: #{spectrogram_clip_layer.4} parent=0 // pred_fallthru
    _

// kernel: spectrogram_clip_layer.3
$region0: #{spectrogram_clip_layer.3}
  #allocation0 [shape = 'u32[]', space=smem, size = 0x4, offset = 0x4, fixed_abs, tag = 'smem constant byte address 0x4 - core index']
  #allocation1 [shape = 'u32[72,128]{1,0:T(1,128)}', space=vmem, size = 0x9000, scoped, tag = 'internal scratch']
  %s0 = inlined_call_operand.hbm [shape: f32[16,32], index: 0, kind: input, shape index: {}]
  %s1 = inlined_call_operand.vmem [shape: f32[1,32], index: 1, kind: input, shape index: {}]
  %s2 = inlined_call_operand.vmem [shape: f32[1,32], index: 2, kind: input, shape index: {}]
  %s3 = inlined_call_operand.hbm [shape: bf16[32,96], index: 3, kind: input, shape index: {}]
  %s4 = inlined_call_operand.vmem [shape: f32[1,96], index: 4, kind: input, shape index: {}]
  %s5 = inlined_call_operand.vmem [shape: bf16[16,96], index: 5, kind: output, shape index: {}]
  %s6 = sld [smem:[#allocation0]]
  $region38: #{spectrogram_clip_layer.3} parent=0
    _
  %s8 = ssub.s32 1, %s6
  %s9 = scalar_select 0, %s8, %s6
  $region1: #{spectrogram_clip_layer.3} parent=0
    #allocation2 [shape = 'u8[8192]{0}', space=vmem, size = 0x2000, scoped, tag = 'input window, operand 0, single buffered']
    #allocation3 [shape = 's32[1]{0}', space=sflag, size = 0x4, scoped, tag = 'scoped memory for spectrogram_clip_layer.3']
    #allocation4 [shape = 'u8[8192]{0}', space=vmem, size = 0x2000, scoped, tag = 'input window, operand 3, single buffered']
    #allocation5 [shape = 's32[1]{0}', space=sflag, size = 0x4, scoped, tag = 'scoped memory for spectrogram_clip_layer.3']
    %10 = vsyncpa [#allocation3], 0
    %11 = vsyncpa [#allocation5], 0
    // Predicated region
    $region2: #{spectrogram_clip_layer.3} parent=1 // pred_check
      _
    $region3: #{spectrogram_clip_layer.3} parent=1 // pred_check_branch
      %13 = sbr.rel (0) target = $region5
    $region4: #{spectrogram_clip_layer.3} parent=1 // pred_region
      %15 = vsyncadd [#allocation3], 0
      %s16 = sshll.u32 %s0, 4
      %s17 = int_to_ptr.hbm [resolvable:$true] %s16
      %s18 = sshll.u32 [#allocation2], 4
      %s19 = int_to_ptr.vmem [resolvable:$true] %s18
      %24 = dma.hbm_to_vmem [thread:$0]  %s17, 256, %s19, [#allocation3], 128, 128, 8
    $region5: #{spectrogram_clip_layer.3} parent=1 // pred_fallthru
      _
    // Predicated region
    $region6: #{spectrogram_clip_layer.3} parent=1 // pred_check
      _
    $region7: #{spectrogram_clip_layer.3} parent=1 // pred_check_branch
      %26 = sbr.rel (0) target = $region9
    $region8: #{spectrogram_clip_layer.3} parent=1 // pred_region
      _
    $region9: #{spectrogram_clip_layer.3} parent=1 // pred_fallthru
      _
    // Predicated region
    $region10: #{spectrogram_clip_layer.3} parent=1 // pred_check
      _
    $region11: #{spectrogram_clip_layer.3} parent=1 // pred_check_branch
      %28 = sbr.rel (0) target = $region13
    $region12: #{spectrogram_clip_layer.3} parent=1 // pred_region
      _
    $region13: #{spectrogram_clip_layer.3} parent=1 // pred_fallthru
      _
    // Predicated region
    $region14: #{spectrogram_clip_layer.3} parent=1 // pred_check
      _
    $region15: #{spectrogram_clip_layer.3} parent=1 // pred_check_branch
      %30 = sbr.rel (0) target = $region17
    $region16: #{spectrogram_clip_layer.3} parent=1 // pred_region
      %32 = vsyncadd [#allocation5], 0
      %s33 = sshll.u32 %s3, 4
      %s34 = int_to_ptr.hbm [resolvable:$true] %s33
      %s35 = sshll.u32 [#allocation4], 4
      %s36 = int_to_ptr.vmem [resolvable:$true] %s35
      %41 = dma.hbm_to_vmem [thread:$0]  %s34, 256, %s36, [#allocation5], 64, 64, 4
    $region17: #{spectrogram_clip_layer.3} parent=1 // pred_fallthru
      _
    // Predicated region
    $region18: #{spectrogram_clip_layer.3} parent=1 // pred_check
      _
    $region19: #{spectrogram_clip_layer.3} parent=1 // pred_check_branch
      %43 = sbr.rel (0) target = $region21
    $region20: #{spectrogram_clip_layer.3} parent=1 // pred_region
      _
    $region21: #{spectrogram_clip_layer.3} parent=1 // pred_fallthru
      _
    // Predicated region
    $region22: #{spectrogram_clip_layer.3} parent=1 // pred_check
      _
    $region23: #{spectrogram_clip_layer.3} parent=1 // pred_check_branch
      %45 = sbr.rel (0) target = $region25
    $region24: #{spectrogram_clip_layer.3} parent=1 // pred_region
      %47 = dma.done [#allocation3], 256
    $region25: #{spectrogram_clip_layer.3} parent=1 // pred_fallthru
      _
    // Predicated region
    $region26: #{spectrogram_clip_layer.3} parent=1 // pred_check
      _
    $region27: #{spectrogram_clip_layer.3} parent=1 // pred_check_branch
      %49 = sbr.rel (0) target = $region29
    $region28: #{spectrogram_clip_layer.3} parent=1 // pred_region
      %51 = dma.done [#allocation5], 256
    $region29: #{spectrogram_clip_layer.3} parent=1 // pred_fallthru
      _
    %v53 = vld [vmem:[#allocation2] sm:$0xff]
    %v54 = vld [vmem:[#allocation2 + $0x8] sm:$0xff]
    %v55 = vld [vmem:[%s1] sm:$0x1]
    %v56 = vld [vmem:[%s2] sm:$0x1]
    %vm57 = vcmask 261120
    %v58 = vsel %vm57, %v53, 0.0
    %59 = vadd.xlane.f32.xlu0 %v58
    %v60 = vpop.xlane.xlu0 %59
    %v61 = vsel %vm57, %v54, 0.0
    %62 = vadd.xlane.f32.xlu0 %v61
    %v63 = vpop.xlane.xlu0 %62
    %v64 = vrcp.pop 32.0
    %v65 = vmul.f32 32.0, %v64
    %v66 = vsub.f32 1.0, %v65
    %v67 = vmul.f32 %v64, %v66
    %v68 = vadd.f32 %v64, %v67
    %vm69 = vweird.f32 %v64
    %v70 = vsel %vm69, %v64, %v68
    %v71 = vmul.f32 %v60, %v70
    %v72 = vmul.f32 %v63, %v70
    %v73 = vsub.f32 %v53, %v71
    %v74 = vsub.f32 %v54, %v72
    %v75 = vmul.f32 %v73, %v73
    %v76 = vmul.f32 %v74, %v74
    %v77 = vsel %vm57, %v75, 0.0
    %78 = vadd.xlane.f32.xlu0 %v77
    %v79 = vpop.xlane.xlu0 %78
    %v80 = vsel %vm57, %v76, 0.0
    %81 = vadd.xlane.f32.xlu0 %v80
    %v82 = vpop.xlane.xlu0 %81
    %v83 = vmul.f32 %v79, %v70
    %v84 = vmul.f32 %v82, %v70
    %v85 = vadd.f32 %v83, 1e-05
    %v86 = vadd.f32 %v84, 1e-05
    %v87 = vrsqrt.pop %v85
    %v88 = vmul.f32 %v87, %v85
    %v89 = vmul.f32 %v88, %v87
    %v90 = vmul.f32 0.5, %v89
    %v91 = vsub.f32 1.5, %v90
    %v92 = vmul.f32 %v87, %v91
    %vm93 = vweird.f32 %v85
    %vm94 = vweird.f32 %v87
    %vm95 = vmor %vm93, %vm94
    %v96 = vsel %vm95, %v87, %v92
    %v97 = vrsqrt.pop %v86
    %v98 = vmul.f32 %v97, %v86
    %v99 = vmul.f32 %v98, %v97
    %v100 = vmul.f32 0.5, %v99
    %v101 = vsub.f32 1.5, %v100
    %v102 = vmul.f32 %v97, %v101
    %vm103 = vweird.f32 %v86
    %vm104 = vweird.f32 %v97
    %vm105 = vmor %vm103, %vm104
    %v106 = vsel %vm105, %v97, %v102
    %v107 = vmul.f32 %v73, %v96
    %v108 = vmul.f32 %v74, %v106
    %v110 = vperm.slane %v55, 0
    %v112 = vmul.f32 %v107, %v110
    %v113 = vmul.f32 %v108, %v110
    %v115 = vperm.slane %v56, 0
    %v117 = vadd.f32 %v112, %v115
    %v118 = vadd.f32 %v113, %v115
    %v119 = vpack.c.bf16 %v118, %v117
    %v120 = vld [vmem:[#allocation4] sm:$0xf]
    %v121 = vld [vmem:[#allocation4 + $0x4] sm:$0xf]
    %v122 = vld [vmem:[#allocation4 + $0x8] sm:$0xf]
    %v123 = vld [vmem:[#allocation4 + $0xc] sm:$0xf]
    %v124 = vld [vmem:[%s4] sm:$0x1]
    %v126 = vperm.slane %v124, 0
    %v132 = vunpack.c.l.b16 %v120
    %v133 = vunpack.c.l.b16 %v121
    %v134 = vunpack.c.l.b16 %v122
    %v135 = vunpack.c.l.b16 %v123
    %v136 = vpack.c.b16 %v133, %v132
    %v137 = vpack.c.b16 %v135, %v134
    %v141 = vsel %vm57, %v119, 0
    %143 = vmatpush.bf16.msra.mxu0 0
    %144 = vmatpush.bf16.msra.mxu0 0
    %145 = vmatpush.bf16.msra.mxu0 0
    %146 = vmatpush.bf16.msra.mxu0 0
    %147 = vmatpush.bf16.msra.mxu0 0
    %148 = vmatpush.bf16.msra.mxu0 0
    %149 = vmatpush.bf16.msra.mxu0 %v137
    %150 = vmatpush.bf16.msra.mxu0 %v136
    %151 = vmatmul.bf16.gmra.mxu0 %v141
    %v152 = vpop.f32.mrf.mxu0
    %v153 = vadd.f32 %v126, %v152
    %v154 = vpop.f32.mrf.mxu0
    %v155 = vadd.f32 %v126, %v154
    %156 = vdwg.mxu0
    %v157 = vpack.c.bf16 %v153, %v153
    %v158 = vpack.c.bf16 %v155, %v155
    %vm159 = vcmask 781312
    %160 = vst.msk [vmem:[%s5] sm:$0xf] %vm159, %v157
    %161 = vst.msk [vmem:[%s5 + $0x4] sm:$0xf] %vm159, %v158
    // Predicated region
    $region30: #{spectrogram_clip_layer.3} parent=1 // pred_check
      _
    $region31: #{spectrogram_clip_layer.3} parent=1 // pred_check_branch
      %163 = sbr.rel (0) target = $region33
    $region32: #{spectrogram_clip_layer.3} parent=1 // pred_region
      _
    $region33: #{spectrogram_clip_layer.3} parent=1 // pred_fallthru
      _
    // Predicated region
    $region34: #{spectrogram_clip_layer.3} parent=1 // pred_check
      _
    $region35: #{spectrogram_clip_layer.3} parent=1 // pred_check_branch
      %165 = sbr.rel (0) target = $region37
    $region36: #{spectrogram_clip_layer.3} parent=1 // pred_region
      _
    $region37: #{spectrogram_clip_layer.3} parent=1 // pred_fallthru
      _
    %166 = vsyncpa [#allocation3], 1
    %167 = vsyncpa [#allocation5], 1

// kernel: spectrogram_clip_layer.5
$region0: #{spectrogram_clip_layer.5}
  #allocation0 [shape = 'u32[]', space=smem, size = 0x4, offset = 0x4, fixed_abs, tag = 'smem constant byte address 0x4 - core index']
  #allocation1 [shape = 'u32[72,128]{1,0:T(1,128)}', space=vmem, size = 0x9000, scoped, tag = 'internal scratch']
  %s0 = inlined_call_operand.vmem [shape: bf16[16,32], index: 0, kind: input, shape index: {}]
  %s1 = inlined_call_operand.vmem [shape: f32[16,32], index: 1, kind: input, shape index: {}]
  %s2 = inlined_call_operand.vmem [shape: bf16[32,32], index: 2, kind: input, shape index: {}]
  %s3 = inlined_call_operand.vmem [shape: f32[1,32], index: 3, kind: input, shape index: {}]
  %s4 = inlined_call_operand.vmem [shape: f32[1,32], index: 4, kind: input, shape index: {}]
  %s5 = inlined_call_operand.vmem [shape: f32[1,32], index: 5, kind: input, shape index: {}]
  %s6 = inlined_call_operand.vmem [shape: bf16[32,128], index: 6, kind: input, shape index: {}]
  %s7 = inlined_call_operand.vmem [shape: f32[1,128], index: 7, kind: input, shape index: {}]
  %s8 = inlined_call_operand.vmem [shape: bf16[128,32], index: 8, kind: input, shape index: {}]
  %s9 = inlined_call_operand.vmem [shape: f32[1,32], index: 9, kind: input, shape index: {}]
  %s10 = inlined_call_operand.hbm [shape: f32[16,32], index: 10, kind: output, shape index: {}]
  %s11 = sld [smem:[#allocation0]]
  $region50: #{spectrogram_clip_layer.5} parent=0
    _
  %s13 = ssub.s32 1, %s11
  %s14 = scalar_select 0, %s13, %s11
  $region1: #{spectrogram_clip_layer.5} parent=0
    #allocation2 [shape = 'u8[8192]{0}', space=vmem, size = 0x2000, scoped, tag = 'output window, operand 0, single buffered']
    #allocation3 [shape = 's32[1]{0}', space=sflag, size = 0x4, scoped, tag = 'scoped memory for spectrogram_clip_layer.5']
    %15 = vsyncpa [#allocation3], 0
    // Predicated region
    $region2: #{spectrogram_clip_layer.5} parent=1 // pred_check
      _
    $region3: #{spectrogram_clip_layer.5} parent=1 // pred_check_branch
      %17 = sbr.rel (0) target = $region5
    $region4: #{spectrogram_clip_layer.5} parent=1 // pred_region
      _
    $region5: #{spectrogram_clip_layer.5} parent=1 // pred_fallthru
      _
    // Predicated region
    $region6: #{spectrogram_clip_layer.5} parent=1 // pred_check
      _
    $region7: #{spectrogram_clip_layer.5} parent=1 // pred_check_branch
      %19 = sbr.rel (0) target = $region9
    $region8: #{spectrogram_clip_layer.5} parent=1 // pred_region
      _
    $region9: #{spectrogram_clip_layer.5} parent=1 // pred_fallthru
      _
    // Predicated region
    $region10: #{spectrogram_clip_layer.5} parent=1 // pred_check
      _
    $region11: #{spectrogram_clip_layer.5} parent=1 // pred_check_branch
      %21 = sbr.rel (0) target = $region13
    $region12: #{spectrogram_clip_layer.5} parent=1 // pred_region
      _
    $region13: #{spectrogram_clip_layer.5} parent=1 // pred_fallthru
      _
    // Predicated region
    $region14: #{spectrogram_clip_layer.5} parent=1 // pred_check
      _
    $region15: #{spectrogram_clip_layer.5} parent=1 // pred_check_branch
      %23 = sbr.rel (0) target = $region17
    $region16: #{spectrogram_clip_layer.5} parent=1 // pred_region
      _
    $region17: #{spectrogram_clip_layer.5} parent=1 // pred_fallthru
      _
    // Predicated region
    $region18: #{spectrogram_clip_layer.5} parent=1 // pred_check
      _
    $region19: #{spectrogram_clip_layer.5} parent=1 // pred_check_branch
      %25 = sbr.rel (0) target = $region21
    $region20: #{spectrogram_clip_layer.5} parent=1 // pred_region
      _
    $region21: #{spectrogram_clip_layer.5} parent=1 // pred_fallthru
      _
    // Predicated region
    $region22: #{spectrogram_clip_layer.5} parent=1 // pred_check
      _
    $region23: #{spectrogram_clip_layer.5} parent=1 // pred_check_branch
      %27 = sbr.rel (0) target = $region25
    $region24: #{spectrogram_clip_layer.5} parent=1 // pred_region
      _
    $region25: #{spectrogram_clip_layer.5} parent=1 // pred_fallthru
      _
    // Predicated region
    $region26: #{spectrogram_clip_layer.5} parent=1 // pred_check
      _
    $region27: #{spectrogram_clip_layer.5} parent=1 // pred_check_branch
      %29 = sbr.rel (0) target = $region29
    $region28: #{spectrogram_clip_layer.5} parent=1 // pred_region
      _
    $region29: #{spectrogram_clip_layer.5} parent=1 // pred_fallthru
      _
    // Predicated region
    $region30: #{spectrogram_clip_layer.5} parent=1 // pred_check
      _
    $region31: #{spectrogram_clip_layer.5} parent=1 // pred_check_branch
      %31 = sbr.rel (0) target = $region33
    $region32: #{spectrogram_clip_layer.5} parent=1 // pred_region
      _
    $region33: #{spectrogram_clip_layer.5} parent=1 // pred_fallthru
      _
    // Predicated region
    $region34: #{spectrogram_clip_layer.5} parent=1 // pred_check
      _
    $region35: #{spectrogram_clip_layer.5} parent=1 // pred_check_branch
      %33 = sbr.rel (0) target = $region37
    $region36: #{spectrogram_clip_layer.5} parent=1 // pred_region
      _
    $region37: #{spectrogram_clip_layer.5} parent=1 // pred_fallthru
      _
    // Predicated region
    $region38: #{spectrogram_clip_layer.5} parent=1 // pred_check
      _
    $region39: #{spectrogram_clip_layer.5} parent=1 // pred_check_branch
      %35 = sbr.rel (0) target = $region41
    $region40: #{spectrogram_clip_layer.5} parent=1 // pred_region
      _
    $region41: #{spectrogram_clip_layer.5} parent=1 // pred_fallthru
      _
    %v37 = vld [vmem:[%s0] sm:$0xf]
    %v38 = vld [vmem:[%s0 + $0x4] sm:$0xf]
    %v39 = vld [vmem:[%s1] sm:$0xff]
    %v40 = vld [vmem:[%s1 + $0x8] sm:$0xff]
    %v41 = vld [vmem:[%s2] sm:$0xf]
    %v42 = vld [vmem:[%s2 + $0x4] sm:$0xf]
    %v43 = vld [vmem:[%s2 + $0x8] sm:$0xf]
    %v44 = vld [vmem:[%s2 + $0xc] sm:$0xf]
    %v45 = vld [vmem:[%s3] sm:$0x1]
    %v47 = vperm.slane %v45, 0
    %v51 = vunpack.c.l.b16 %v37
    %v52 = vunpack.c.l.b16 %v38
    %v53 = vpack.c.b16 %v52, %v51
    %v58 = vunpack.c.l.b16 %v41
    %v59 = vunpack.c.l.b16 %v42
    %v60 = vunpack.c.l.b16 %v43
    %v61 = vunpack.c.l.b16 %v44
    %v62 = vpack.c.b16 %v59, %v58
    %v63 = vpack.c.b16 %v61, %v60
    %vm66 = vcmask 261120
    %v68 = vsel %vm66, %v53, 0
    %70 = vmatpush.bf16.msra.mxu0 0
    %71 = vmatpush.bf16.msra.mxu0 0
    %72 = vmatpush.bf16.msra.mxu0 0
    %73 = vmatpush.bf16.msra.mxu0 0
    %74 = vmatpush.bf16.msra.mxu0 0
    %75 = vmatpush.bf16.msra.mxu0 0
    %76 = vmatpush.bf16.msra.mxu0 %v63
    %77 = vmatpush.bf16.msra.mxu0 %v62
    %78 = vmatmul.bf16.gmra.mxu0 %v68
    %v79 = vpop.f32.mrf.mxu0
    %v80 = vadd.f32 %v47, %v79
    %v81 = vpop.f32.mrf.mxu0
    %v82 = vadd.f32 %v47, %v81
    %83 = vdwg.mxu0
    %v84 = vadd.f32 %v80, %v39
    %v85 = vadd.f32 %v82, %v40
    %v86 = vld [vmem:[%s4] sm:$0x1]
    %v87 = vld [vmem:[%s5] sm:$0x1]
    %v88 = vsel %vm66, %v84, 0.0
    %89 = vadd.xlane.f32.xlu0 %v88
    %v90 = vpop.xlane.xlu0 %89
    %v91 = vsel %vm66, %v85, 0.0
    %92 = vadd.xlane.f32.xlu0 %v91
    %v93 = vpop.xlane.xlu0 %92
    %v94 = vrcp.pop 32.0
    %v95 = vmul.f32 32.0, %v94
    %v96 = vsub.f32 1.0, %v95
    %v97 = vmul.f32 %v94, %v96
    %v98 = vadd.f32 %v94, %v97
    %vm99 = vweird.f32 %v94
    %v100 = vsel %vm99, %v94, %v98
    %v101 = vmul.f32 %v90, %v100
    %v102 = vmul.f32 %v93, %v100
    %v103 = vsub.f32 %v84, %v101
    %v104 = vsub.f32 %v85, %v102
    %v105 = vmul.f32 %v103, %v103
    %v106 = vmul.f32 %v104, %v104
    %v107 = vsel %vm66, %v105, 0.0
    %108 = vadd.xlane.f32.xlu0 %v107
    %v109 = vpop.xlane.xlu0 %108
    %v110 = vsel %vm66, %v106, 0.0
    %111 = vadd.xlane.f32.xlu0 %v110
    %v112 = vpop.xlane.xlu0 %111
    %v113 = vmul.f32 %v109, %v100
    %v114 = vmul.f32 %v112, %v100
    %v115 = vadd.f32 %v113, 1e-05
    %v116 = vadd.f32 %v114, 1e-05
    %v117 = vrsqrt.pop %v115
    %v118 = vmul.f32 %v117, %v115
    %v119 = vmul.f32 %v118, %v117
    %v120 = vmul.f32 0.5, %v119
    %v121 = vsub.f32 1.5, %v120
    %v122 = vmul.f32 %v117, %v121
    %vm123 = vweird.f32 %v115
    %vm124 = vweird.f32 %v117
    %vm125 = vmor %vm123, %vm124
    %v126 = vsel %vm125, %v117, %v122
    %v127 = vrsqrt.pop %v116
    %v128 = vmul.f32 %v127, %v116
    %v129 = vmul.f32 %v128, %v127
    %v130 = vmul.f32 0.5, %v129
    %v131 = vsub.f32 1.5, %v130
    %v132 = vmul.f32 %v127, %v131
    %vm133 = vweird.f32 %v116
    %vm134 = vweird.f32 %v127
    %vm135 = vmor %vm133, %vm134
    %v136 = vsel %vm135, %v127, %v132
    %v137 = vmul.f32 %v103, %v126
    %v138 = vmul.f32 %v104, %v136
    %v140 = vperm.slane %v86, 0
    %v142 = vmul.f32 %v137, %v140
    %v143 = vmul.f32 %v138, %v140
    %v145 = vperm.slane %v87, 0
    %v147 = vadd.f32 %v142, %v145
    %v148 = vadd.f32 %v143, %v145
    %v149 = vpack.c.bf16 %v148, %v147
    %v150 = vld [vmem:[%s6] sm:$0xf]
    %v151 = vld [vmem:[%s6 + $0x4] sm:$0xf]
    %v152 = vld [vmem:[%s6 + $0x8] sm:$0xf]
    %v153 = vld [vmem:[%s6 + $0xc] sm:$0xf]
    %v154 = vld [vmem:[%s7] sm:$0x1]
    %v156 = vperm.slane %v154, 0
    %v162 = vunpack.c.l.b16 %v150
    %v163 = vunpack.c.l.b16 %v151
    %v164 = vunpack.c.l.b16 %v152
    %v165 = vunpack.c.l.b16 %v153
    %v166 = vpack.c.b16 %v163, %v162
    %v167 = vpack.c.b16 %v165, %v164
    %v171 = vsel %vm66, %v149, 0
    %173 = vmatpush.bf16.msra.mxu0 0
    %174 = vmatpush.bf16.msra.mxu0 0
    %175 = vmatpush.bf16.msra.mxu0 0
    %176 = vmatpush.bf16.msra.mxu0 0
    %177 = vmatpush.bf16.msra.mxu0 0
    %178 = vmatpush.bf16.msra.mxu0 0
    %179 = vmatpush.bf16.msra.mxu0 %v167
    %180 = vmatpush.bf16.msra.mxu0 %v166
    %181 = vmatmul.bf16.gmra.mxu0 %v171
    %v182 = vpop.f32.mrf.mxu0
    %v183 = vadd.f32 %v156, %v182
    %v184 = vpop.f32.mrf.mxu0
    %v185 = vadd.f32 %v156, %v184
    %186 = vdwg.mxu0
    %v187 = vmul.f32 %v183, 1.702
    %v188 = vmul.f32 %v185, 1.702
    %v189 = vxor.u32 %v187, 2147483648
    %v190 = vxor.u32 %v188, 2147483648
    %v191 = vmul.f32 %v189, 1.442695
    %v192 = vpow.pop %v191
    %v193 = vmul.f32 %v190, 1.442695
    %v194 = vpow.pop %v193
    %v195 = vadd.f32 %v192, 1.0
    %v196 = vadd.f32 %v194, 1.0
    %v197 = vrcp.pop %v195
    %v198 = vmul.f32 %v195, %v197
    %v199 = vsub.f32 1.0, %v198
    %v200 = vmul.f32 %v197, %v199
    %v201 = vadd.f32 %v197, %v200
    %vm202 = vweird.f32 %v195
    %vm203 = vweird.f32 %v197
    %vm204 = vmor %vm202, %vm203
    %v205 = vsel %vm204, %v197, %v201
    %v206 = vand.u32 2147483647, %v195
    %vm207 = vcmp.eq.f32.partialorder %v206, 8.507059e+37
    %v208 = vand.u32 %v195, 2147483648
    %v209 = vor.u32 1.1754944e-38, %v208
    %v210 = vsel %vm207, %v209, %v205
    %v211 = vmul.f32 1.0, %v210
    %v212 = vrcp.pop %v196
    %v213 = vmul.f32 %v196, %v212
    %v214 = vsub.f32 1.0, %v213
    %v215 = vmul.f32 %v212, %v214
    %v216 = vadd.f32 %v212, %v215
    %vm217 = vweird.f32 %v196
    %vm218 = vweird.f32 %v212
    %vm219 = vmor %vm217, %vm218
    %v220 = vsel %vm219, %v212, %v216
    %v221 = vand.u32 2147483647, %v196
    %vm222 = vcmp.eq.f32.partialorder %v221, 8.507059e+37
    %v223 = vand.u32 %v196, 2147483648
    %v224 = vor.u32 1.1754944e-38, %v223
    %v225 = vsel %vm222, %v224, %v220
    %v226 = vmul.f32 1.0, %v225
    %v227 = vmul.f32 %v183, %v211
    %v228 = vmul.f32 %v185, %v226
    %v229 = vpack.c.bf16 %v228, %v227
    %v230 = vld [vmem:[%s8] sm:$0xf]
    %v231 = vld [vmem:[%s8 + $0x4] sm:$0xf]
    %v232 = vld [vmem:[%s8 + $0x8] sm:$0xf]
    %v233 = vld [vmem:[%s8 + $0xc] sm:$0xf]
    %v234 = vld [vmem:[%s8 + $0x10] sm:$0xf]
    %v235 = vld [vmem:[%s8 + $0x14] sm:$0xf]
    %v236 = vld [vmem:[%s8 + $0x18] sm:$0xf]
    %v237 = vld [vmem:[%s8 + $0x1c] sm:$0xf]
    %v238 = vld [vmem:[%s8 + $0x20] sm:$0xf]
    %v239 = vld [vmem:[%s8 + $0x24] sm:$0xf]
    %v240 = vld [vmem:[%s8 + $0x28] sm:$0xf]
    %v241 = vld [vmem:[%s8 + $0x2c] sm:$0xf]
    %v242 = vld [vmem:[%s8 + $0x30] sm:$0xf]
    %v243 = vld [vmem:[%s8 + $0x34] sm:$0xf]
    %v244 = vld [vmem:[%s8 + $0x38] sm:$0xf]
    %v245 = vld [vmem:[%s8 + $0x3c] sm:$0xf]
    %v246 = vld [vmem:[%s9] sm:$0x1]
    %v248 = vperm.slane %v246, 0
    %v266 = vunpack.c.l.b16 %v230
    %v267 = vunpack.c.l.b16 %v231
    %v268 = vunpack.c.l.b16 %v232
    %v269 = vunpack.c.l.b16 %v233
    %v270 = vunpack.c.l.b16 %v234
    %v271 = vunpack.c.l.b16 %v235
    %v272 = vunpack.c.l.b16 %v236
    %v273 = vunpack.c.l.b16 %v237
    %v274 = vunpack.c.l.b16 %v238
    %v275 = vunpack.c.l.b16 %v239
    %v276 = vunpack.c.l.b16 %v240
    %v277 = vunpack.c.l.b16 %v241
    %v278 = vunpack.c.l.b16 %v242
    %v279 = vunpack.c.l.b16 %v243
    %v280 = vunpack.c.l.b16 %v244
    %v281 = vunpack.c.l.b16 %v245
    %v282 = vpack.c.b16 %v267, %v266
    %v283 = vpack.c.b16 %v269, %v268
    %v284 = vpack.c.b16 %v271, %v270
    %v285 = vpack.c.b16 %v273, %v272
    %v286 = vpack.c.b16 %v275, %v274
    %v287 = vpack.c.b16 %v277, %v276
    %v288 = vpack.c.b16 %v279, %v278
    %v289 = vpack.c.b16 %v281, %v280
    %298 = vmatpush.bf16.msra.mxu0 %v289
    %299 = vmatpush.bf16.msra.mxu0 %v288
    %300 = vmatpush.bf16.msra.mxu0 %v287
    %301 = vmatpush.bf16.msra.mxu0 %v286
    %302 = vmatpush.bf16.msra.mxu0 %v285
    %303 = vmatpush.bf16.msra.mxu0 %v284
    %304 = vmatpush.bf16.msra.mxu0 %v283
    %305 = vmatpush.bf16.msra.mxu0 %v282
    %306 = vmatmul.bf16.gmra.mxu0 %v229
    %v307 = vpop.f32.mrf.mxu0
    %v308 = vadd.f32 %v248, %v307
    %v309 = vpop.f32.mrf.mxu0
    %v310 = vadd.f32 %v248, %v309
    %311 = vdwg.mxu0
    %v312 = vadd.f32 %v308, %v84
    %v313 = vadd.f32 %v310, %v85
    %314 = vst.msk [vmem:[#allocation2] sm:$0xff] %vm66, %v312
    %315 = vst.msk [vmem:[#allocation2 + $0x8] sm:$0xff] %vm66, %v313
    // Predicated region
    $region42: #{spectrogram_clip_layer.5} parent=1 // pred_check
      _
    $region43: #{spectrogram_clip_layer.5} parent=1 // pred_check_branch
      %317 = sbr.rel (0) target = $region45
    $region44: #{spectrogram_clip_layer.5} parent=1 // pred_region
      %319 = vsyncadd [#allocation3], 0
      %s320 = sshll.u32 [#allocation2], 4
      %s321 = int_to_ptr.vmem [resolvable:$true] %s320
      %s322 = sshll.u32 %s10, 4
      %s323 = int_to_ptr.hbm [resolvable:$true] %s322
      %328 = dma.vmem_to_hbm [thread:$0]  %s321, 256, %s323, [#allocation3], 128, 128, 8
    $region45: #{spectrogram_clip_layer.5} parent=1 // pred_fallthru
      _
    // Predicated region
    $region46: #{spectrogram_clip_layer.5} parent=1 // pred_check
      _
    $region47: #{spectrogram_clip_layer.5} parent=1 // pred_check_branch
      %330 = sbr.rel (0) target = $region49
    $region48: #{spectrogram_clip_layer.5} parent=1 // pred_region
      %332 = dma.done [#allocation3], 256
    $region49: #{spectrogram_clip_layer.5} parent=1 // pred_fallthru
      _
    %333 = vsyncpa [#allocation3], 1

// kernel: spectrogram_clip_layer.4
$region0: #{spectrogram_clip_layer.4}
  #allocation0 [shape = 'u32[]', space=smem, size = 0x4, offset = 0x4, fixed_abs, tag = 'smem constant byte address 0x4 - core index']
  #allocation1 [shape = 'u32[72,128]{1,0:T(1,128)}', space=vmem, size = 0x9000, scoped, tag = 'internal scratch']
  %s0 = inlined_call_operand.vmem [shape: bf16[8,8,8], index: 0, kind: input, shape index: {}]
  %s1 = inlined_call_operand.vmem [shape: bf16[8,8,8], index: 1, kind: input, shape index: {}]
  %s2 = inlined_call_operand.vmem [shape: bf16[8,8,8], index: 2, kind: input, shape index: {}]
  %s3 = inlined_call_operand.vmem [shape: bf16[8,8,8], index: 3, kind: output, shape index: {}]
  %s4 = sld [smem:[#allocation0]]
  $region22: #{spectrogram_clip_layer.4} parent=0
    _
  %s6 = ssub.s32 1, %s4
  %s7 = scalar_select 0, %s6, %s4
  // Predicated region
  $region2: #{spectrogram_clip_layer.4} parent=0 // pred_check
    _
  $region3: #{spectrogram_clip_layer.4} parent=0 // pred_check_branch
    %9 = sbr.rel (0) target = $region5
  $region4: #{spectrogram_clip_layer.4} parent=0 // pred_region
    _
  $region5: #{spectrogram_clip_layer.4} parent=0 // pred_fallthru
    _
  // Predicated region
  $region6: #{spectrogram_clip_layer.4} parent=0 // pred_check
    _
  $region7: #{spectrogram_clip_layer.4} parent=0 // pred_check_branch
    %11 = sbr.rel (0) target = $region9
  $region8: #{spectrogram_clip_layer.4} parent=0 // pred_region
    _
  $region9: #{spectrogram_clip_layer.4} parent=0 // pred_fallthru
    _
  // Predicated region
  $region10: #{spectrogram_clip_layer.4} parent=0 // pred_check
    _
  $region11: #{spectrogram_clip_layer.4} parent=0 // pred_check_branch
    %13 = sbr.rel (0) target = $region13
  $region12: #{spectrogram_clip_layer.4} parent=0 // pred_region
    _
  $region13: #{spectrogram_clip_layer.4} parent=0 // pred_fallthru
    _
  %v15 = vld [vmem:[%s0] sm:$0xf]
  %v16 = vld [vmem:[%s0 + $0x4] sm:$0xf]
  %v17 = vld [vmem:[%s0 + $0x8] sm:$0xf]
  %v18 = vld [vmem:[%s0 + $0xc] sm:$0xf]
  %v19 = vld [vmem:[%s0 + $0x10] sm:$0xf]
  %v20 = vld [vmem:[%s0 + $0x14] sm:$0xf]
  %v21 = vld [vmem:[%s0 + $0x18] sm:$0xf]
  %v22 = vld [vmem:[%s0 + $0x1c] sm:$0xf]
  %v23 = vld [vmem:[%s1] sm:$0xf]
  %v24 = vld [vmem:[%s1 + $0x4] sm:$0xf]
  %v25 = vld [vmem:[%s1 + $0x8] sm:$0xf]
  %v26 = vld [vmem:[%s1 + $0xc] sm:$0xf]
  %v27 = vld [vmem:[%s1 + $0x10] sm:$0xf]
  %v28 = vld [vmem:[%s1 + $0x14] sm:$0xf]
  %v29 = vld [vmem:[%s1 + $0x18] sm:$0xf]
  %v30 = vld [vmem:[%s1 + $0x1c] sm:$0xf]
  %v31 = vld [vmem:[%s2] sm:$0xf]
  %v32 = vld [vmem:[%s2 + $0x4] sm:$0xf]
  %v33 = vld [vmem:[%s2 + $0x8] sm:$0xf]
  %v34 = vld [vmem:[%s2 + $0xc] sm:$0xf]
  %v35 = vld [vmem:[%s2 + $0x10] sm:$0xf]
  %v36 = vld [vmem:[%s2 + $0x14] sm:$0xf]
  %v37 = vld [vmem:[%s2 + $0x18] sm:$0xf]
  %v38 = vld [vmem:[%s2 + $0x1c] sm:$0xf]
  %vm39 = vcmask 64512
  %v41 = vsel %vm39, %v15, 0
  %v44 = vsel %vm39, %v23, 0
  %46 = vmatpush.bf16.xpose.msra.mxu0 0
  %47 = vmatpush.bf16.xpose.msra.mxu0 0
  %48 = vmatpush.bf16.xpose.msra.mxu0 0
  %49 = vmatpush.bf16.xpose.msra.mxu0 0
  %50 = vmatpush.bf16.xpose.msra.mxu0 0
  %51 = vmatpush.bf16.xpose.msra.mxu0 0
  %52 = vmatpush.bf16.xpose.msra.mxu0 0
  %53 = vmatpush.bf16.xpose.msra.mxu0 %v44
  %54 = vmatmul.bf16.gmra.mxu0 %v41
  %v55 = vpop.f32.mrf.mxu0
  %v56 = vadd.f32 0.0, %v55
  %v57 = vpop.f32.mrf.mxu0
  %58 = vdwg.mxu0
  %v60 = vsel %vm39, %v16, 0
  %v63 = vsel %vm39, %v24, 0
  %65 = vmatpush.bf16.xpose.msra.mxu0 0
  %66 = vmatpush.bf16.xpose.msra.mxu0 0
  %67 = vmatpush.bf16.xpose.msra.mxu0 0
  %68 = vmatpush.bf16.xpose.msra.mxu0 0
  %69 = vmatpush.bf16.xpose.msra.mxu0 0
  %70 = vmatpush.bf16.xpose.msra.mxu0 0
  %71 = vmatpush.bf16.xpose.msra.mxu0 0
  %72 = vmatpush.bf16.xpose.msra.mxu0 %v63
  %73 = vmatmul.bf16.gmra.mxu0 %v60
  %v74 = vpop.f32.mrf.mxu0
  %v75 = vadd.f32 0.0, %v74
  %v76 = vpop.f32.mrf.mxu0
  %77 = vdwg.mxu0
  %v79 = vsel %vm39, %v17, 0
  %v82 = vsel %vm39, %v25, 0
  %84 = vmatpush.bf16.xpose.msra.mxu0 0
  %85 = vmatpush.bf16.xpose.msra.mxu0 0
  %86 = vmatpush.bf16.xpose.msra.mxu0 0
  %87 = vmatpush.bf16.xpose.msra.mxu0 0
  %88 = vmatpush.bf16.xpose.msra.mxu0 0
  %89 = vmatpush.bf16.xpose.msra.mxu0 0
  %90 = vmatpush.bf16.xpose.msra.mxu0 0
  %91 = vmatpush.bf16.xpose.msra.mxu0 %v82
  %92 = vmatmul.bf16.gmra.mxu0 %v79
  %v93 = vpop.f32.mrf.mxu0
  %v94 = vadd.f32 0.0, %v93
  %v95 = vpop.f32.mrf.mxu0
  %96 = vdwg.mxu0
  %v98 = vsel %vm39, %v18, 0
  %v101 = vsel %vm39, %v26, 0
  %103 = vmatpush.bf16.xpose.msra.mxu0 0
  %104 = vmatpush.bf16.xpose.msra.mxu0 0
  %105 = vmatpush.bf16.xpose.msra.mxu0 0
  %106 = vmatpush.bf16.xpose.msra.mxu0 0
  %107 = vmatpush.bf16.xpose.msra.mxu0 0
  %108 = vmatpush.bf16.xpose.msra.mxu0 0
  %109 = vmatpush.bf16.xpose.msra.mxu0 0
  %110 = vmatpush.bf16.xpose.msra.mxu0 %v101
  %111 = vmatmul.bf16.gmra.mxu0 %v98
  %v112 = vpop.f32.mrf.mxu0
  %v113 = vadd.f32 0.0, %v112
  %v114 = vpop.f32.mrf.mxu0
  %115 = vdwg.mxu0
  %v117 = vsel %vm39, %v19, 0
  %v120 = vsel %vm39, %v27, 0
  %122 = vmatpush.bf16.xpose.msra.mxu0 0
  %123 = vmatpush.bf16.xpose.msra.mxu0 0
  %124 = vmatpush.bf16.xpose.msra.mxu0 0
  %125 = vmatpush.bf16.xpose.msra.mxu0 0
  %126 = vmatpush.bf16.xpose.msra.mxu0 0
  %127 = vmatpush.bf16.xpose.msra.mxu0 0
  %128 = vmatpush.bf16.xpose.msra.mxu0 0
  %129 = vmatpush.bf16.xpose.msra.mxu0 %v120
  %130 = vmatmul.bf16.gmra.mxu0 %v117
  %v131 = vpop.f32.mrf.mxu0
  %v132 = vadd.f32 0.0, %v131
  %v133 = vpop.f32.mrf.mxu0
  %134 = vdwg.mxu0
  %v136 = vsel %vm39, %v20, 0
  %v139 = vsel %vm39, %v28, 0
  %141 = vmatpush.bf16.xpose.msra.mxu0 0
  %142 = vmatpush.bf16.xpose.msra.mxu0 0
  %143 = vmatpush.bf16.xpose.msra.mxu0 0
  %144 = vmatpush.bf16.xpose.msra.mxu0 0
  %145 = vmatpush.bf16.xpose.msra.mxu0 0
  %146 = vmatpush.bf16.xpose.msra.mxu0 0
  %147 = vmatpush.bf16.xpose.msra.mxu0 0
  %148 = vmatpush.bf16.xpose.msra.mxu0 %v139
  %149 = vmatmul.bf16.gmra.mxu0 %v136
  %v150 = vpop.f32.mrf.mxu0
  %v151 = vadd.f32 0.0, %v150
  %v152 = vpop.f32.mrf.mxu0
  %153 = vdwg.mxu0
  %v155 = vsel %vm39, %v21, 0
  %v158 = vsel %vm39, %v29, 0
  %160 = vmatpush.bf16.xpose.msra.mxu0 0
  %161 = vmatpush.bf16.xpose.msra.mxu0 0
  %162 = vmatpush.bf16.xpose.msra.mxu0 0
  %163 = vmatpush.bf16.xpose.msra.mxu0 0
  %164 = vmatpush.bf16.xpose.msra.mxu0 0
  %165 = vmatpush.bf16.xpose.msra.mxu0 0
  %166 = vmatpush.bf16.xpose.msra.mxu0 0
  %167 = vmatpush.bf16.xpose.msra.mxu0 %v158
  %168 = vmatmul.bf16.gmra.mxu0 %v155
  %v169 = vpop.f32.mrf.mxu0
  %v170 = vadd.f32 0.0, %v169
  %v171 = vpop.f32.mrf.mxu0
  %172 = vdwg.mxu0
  %v174 = vsel %vm39, %v22, 0
  %v177 = vsel %vm39, %v30, 0
  %179 = vmatpush.bf16.xpose.msra.mxu0 0
  %180 = vmatpush.bf16.xpose.msra.mxu0 0
  %181 = vmatpush.bf16.xpose.msra.mxu0 0
  %182 = vmatpush.bf16.xpose.msra.mxu0 0
  %183 = vmatpush.bf16.xpose.msra.mxu0 0
  %184 = vmatpush.bf16.xpose.msra.mxu0 0
  %185 = vmatpush.bf16.xpose.msra.mxu0 0
  %186 = vmatpush.bf16.xpose.msra.mxu0 %v177
  %187 = vmatmul.bf16.gmra.mxu0 %v174
  %v188 = vpop.f32.mrf.mxu0
  %v189 = vadd.f32 0.0, %v188
  %v190 = vpop.f32.mrf.mxu0
  %191 = vdwg.mxu0
  %v192 = vsel %vm39, %v56, -inf
  %193 = vmax.xlane.f32.xlu0 %v192
  %v194 = vpop.xlane.xlu0 %193
  %v195 = vsel %vm39, %v75, -inf
  %196 = vmax.xlane.f32.xlu0 %v195
  %v197 = vpop.xlane.xlu0 %196
  %v198 = vsel %vm39, %v94, -inf
  %199 = vmax.xlane.f32.xlu0 %v198
  %v200 = vpop.xlane.xlu0 %199
  %v201 = vsel %vm39, %v113, -inf
  %202 = vmax.xlane.f32.xlu0 %v201
  %v203 = vpop.xlane.xlu0 %202
  %v204 = vsel %vm39, %v132, -inf
  %205 = vmax.xlane.f32.xlu0 %v204
  %v206 = vpop.xlane.xlu0 %205
  %v207 = vsel %vm39, %v151, -inf
  %208 = vmax.xlane.f32.xlu0 %v207
  %v209 = vpop.xlane.xlu0 %208
  %v210 = vsel %vm39, %v170, -inf
  %211 = vmax.xlane.f32.xlu0 %v210
  %v212 = vpop.xlane.xlu0 %211
  %v213 = vsel %vm39, %v189, -inf
  %214 = vmax.xlane.f32.xlu0 %v213
  %v215 = vpop.xlane.xlu0 %214
  %v216 = vsub.f32 %v56, %v194
  %v217 = vsub.f32 %v75, %v197
  %v218 = vsub.f32 %v94, %v200
  %v219 = vsub.f32 %v113, %v203
  %v220 = vsub.f32 %v132, %v206
  %v221 = vsub.f32 %v151, %v209
  %v222 = vsub.f32 %v170, %v212
  %v223 = vsub.f32 %v189, %v215
  %v224 = vmul.f32 %v216, 1.442695
  %v225 = vpow.pop %v224
  %v226 = vmul.f32 %v217, 1.442695
  %v227 = vpow.pop %v226
  %v228 = vmul.f32 %v218, 1.442695
  %v229 = vpow.pop %v228
  %v230 = vmul.f32 %v219, 1.442695
  %v231 = vpow.pop %v230
  %v232 = vmul.f32 %v220, 1.442695
  %v233 = vpow.pop %v232
  %v234 = vmul.f32 %v221, 1.442695
  %v235 = vpow.pop %v234
  %v236 = vmul.f32 %v222, 1.442695
  %v237 = vpow.pop %v236
  %v238 = vmul.f32 %v223, 1.442695
  %v239 = vpow.pop %v238
  %v240 = vsel %vm39, %v225, 0.0
  %241 = vadd.xlane.f32.xlu0 %v240
  %v242 = vpop.xlane.xlu0 %241
  %v243 = vsel %vm39, %v227, 0.0
  %244 = vadd.xlane.f32.xlu0 %v243
  %v245 = vpop.xlane.xlu0 %244
  %v246 = vsel %vm39, %v229, 0.0
  %247 = vadd.xlane.f32.xlu0 %v246
  %v248 = vpop.xlane.xlu0 %247
  %v249 = vsel %vm39, %v231, 0.0
  %250 = vadd.xlane.f32.xlu0 %v249
  %v251 = vpop.xlane.xlu0 %250
  %v252 = vsel %vm39, %v233, 0.0
  %253 = vadd.xlane.f32.xlu0 %v252
  %v254 = vpop.xlane.xlu0 %253
  %v255 = vsel %vm39, %v235, 0.0
  %256 = vadd.xlane.f32.xlu0 %v255
  %v257 = vpop.xlane.xlu0 %256
  %v258 = vsel %vm39, %v237, 0.0
  %259 = vadd.xlane.f32.xlu0 %v258
  %v260 = vpop.xlane.xlu0 %259
  %v261 = vsel %vm39, %v239, 0.0
  %262 = vadd.xlane.f32.xlu0 %v261
  %v263 = vpop.xlane.xlu0 %262
  %v264 = vrcp.pop %v242
  %v265 = vrcp.pop %v245
  %v266 = vrcp.pop %v248
  %v267 = vrcp.pop %v251
  %v268 = vrcp.pop %v254
  %v269 = vrcp.pop %v257
  %v270 = vrcp.pop %v260
  %v271 = vrcp.pop %v263
  %v272 = vmul.f32 %v225, %v264
  %v273 = vmul.f32 %v227, %v265
  %v274 = vmul.f32 %v229, %v266
  %v275 = vmul.f32 %v231, %v267
  %v276 = vmul.f32 %v233, %v268
  %v277 = vmul.f32 %v235, %v269
  %v278 = vmul.f32 %v237, %v270
  %v279 = vmul.f32 %v239, %v271
  %v280 = vpack.c.bf16 %v272, %v272
  %v281 = vpack.c.bf16 %v273, %v273
  %v282 = vpack.c.bf16 %v274, %v274
  %v283 = vpack.c.bf16 %v275, %v275
  %v284 = vpack.c.bf16 %v276, %v276
  %v285 = vpack.c.bf16 %v277, %v277
  %v286 = vpack.c.bf16 %v278, %v278
  %v287 = vpack.c.bf16 %v279, %v279
  %v289 = vsel %vm39, %v280, 0
  %vm291 = vcmask 1043456
  %v293 = vsel %vm291, %v31, 0
  %295 = vmatpush.bf16.msra.mxu0 0
  %296 = vmatpush.bf16.msra.mxu0 0
  %297 = vmatpush.bf16.msra.mxu0 0
  %298 = vmatpush.bf16.msra.mxu0 0
  %299 = vmatpush.bf16.msra.mxu0 0
  %300 = vmatpush.bf16.msra.mxu0 0
  %301 = vmatpush.bf16.msra.mxu0 0
  %302 = vmatpush.bf16.msra.mxu0 %v293
  %303 = vmatmul.bf16.gmra.mxu0 %v289
  %v304 = vpop.f32.mrf.mxu0
  %v305 = vadd.f32 0.0, %v304
  %v306 = vpop.f32.mrf.mxu0
  %307 = vdwg.mxu0
  %v309 = vsel %vm39, %v281, 0
  %v312 = vsel %vm291, %v32, 0
  %314 = vmatpush.bf16.msra.mxu0 0
  %315 = vmatpush.bf16.msra.mxu0 0
  %316 = vmatpush.bf16.msra.mxu0 0
  %317 = vmatpush.bf16.msra.mxu0 0
  %318 = vmatpush.bf16.msra.mxu0 0
  %319 = vmatpush.bf16.msra.mxu0 0
  %320 = vmatpush.bf16.msra.mxu0 0
  %321 = vmatpush.bf16.msra.mxu0 %v312
  %322 = vmatmul.bf16.gmra.mxu0 %v309
  %v323 = vpop.f32.mrf.mxu0
  %v324 = vadd.f32 0.0, %v323
  %v325 = vpop.f32.mrf.mxu0
  %326 = vdwg.mxu0
  %v328 = vsel %vm39, %v282, 0
  %v331 = vsel %vm291, %v33, 0
  %333 = vmatpush.bf16.msra.mxu0 0
  %334 = vmatpush.bf16.msra.mxu0 0
  %335 = vmatpush.bf16.msra.mxu0 0
  %336 = vmatpush.bf16.msra.mxu0 0
  %337 = vmatpush.bf16.msra.mxu0 0
  %338 = vmatpush.bf16.msra.mxu0 0
  %339 = vmatpush.bf16.msra.mxu0 0
  %340 = vmatpush.bf16.msra.mxu0 %v331
  %341 = vmatmul.bf16.gmra.mxu0 %v328
  %v342 = vpop.f32.mrf.mxu0
  %v343 = vadd.f32 0.0, %v342
  %v344 = vpop.f32.mrf.mxu0
  %345 = vdwg.mxu0
  %v347 = vsel %vm39, %v283, 0
  %v350 = vsel %vm291, %v34, 0
  %352 = vmatpush.bf16.msra.mxu0 0
  %353 = vmatpush.bf16.msra.mxu0 0
  %354 = vmatpush.bf16.msra.mxu0 0
  %355 = vmatpush.bf16.msra.mxu0 0
  %356 = vmatpush.bf16.msra.mxu0 0
  %357 = vmatpush.bf16.msra.mxu0 0
  %358 = vmatpush.bf16.msra.mxu0 0
  %359 = vmatpush.bf16.msra.mxu0 %v350
  %360 = vmatmul.bf16.gmra.mxu0 %v347
  %v361 = vpop.f32.mrf.mxu0
  %v362 = vadd.f32 0.0, %v361
  %v363 = vpop.f32.mrf.mxu0
  %364 = vdwg.mxu0
  %v366 = vsel %vm39, %v284, 0
  %v369 = vsel %vm291, %v35, 0
  %371 = vmatpush.bf16.msra.mxu0 0
  %372 = vmatpush.bf16.msra.mxu0 0
  %373 = vmatpush.bf16.msra.mxu0 0
  %374 = vmatpush.bf16.msra.mxu0 0
  %375 = vmatpush.bf16.msra.mxu0 0
  %376 = vmatpush.bf16.msra.mxu0 0
  %377 = vmatpush.bf16.msra.mxu0 0
  %378 = vmatpush.bf16.msra.mxu0 %v369
  %379 = vmatmul.bf16.gmra.mxu0 %v366
  %v380 = vpop.f32.mrf.mxu0
  %v381 = vadd.f32 0.0, %v380
  %v382 = vpop.f32.mrf.mxu0
  %383 = vdwg.mxu0
  %v385 = vsel %vm39, %v285, 0
  %v388 = vsel %vm291, %v36, 0
  %390 = vmatpush.bf16.msra.mxu0 0
  %391 = vmatpush.bf16.msra.mxu0 0
  %392 = vmatpush.bf16.msra.mxu0 0
  %393 = vmatpush.bf16.msra.mxu0 0
  %394 = vmatpush.bf16.msra.mxu0 0
  %395 = vmatpush.bf16.msra.mxu0 0
  %396 = vmatpush.bf16.msra.mxu0 0
  %397 = vmatpush.bf16.msra.mxu0 %v388
  %398 = vmatmul.bf16.gmra.mxu0 %v385
  %v399 = vpop.f32.mrf.mxu0
  %v400 = vadd.f32 0.0, %v399
  %v401 = vpop.f32.mrf.mxu0
  %402 = vdwg.mxu0
  %v404 = vsel %vm39, %v286, 0
  %v407 = vsel %vm291, %v37, 0
  %409 = vmatpush.bf16.msra.mxu0 0
  %410 = vmatpush.bf16.msra.mxu0 0
  %411 = vmatpush.bf16.msra.mxu0 0
  %412 = vmatpush.bf16.msra.mxu0 0
  %413 = vmatpush.bf16.msra.mxu0 0
  %414 = vmatpush.bf16.msra.mxu0 0
  %415 = vmatpush.bf16.msra.mxu0 0
  %416 = vmatpush.bf16.msra.mxu0 %v407
  %417 = vmatmul.bf16.gmra.mxu0 %v404
  %v418 = vpop.f32.mrf.mxu0
  %v419 = vadd.f32 0.0, %v418
  %v420 = vpop.f32.mrf.mxu0
  %421 = vdwg.mxu0
  %v423 = vsel %vm39, %v287, 0
  %v426 = vsel %vm291, %v38, 0
  %428 = vmatpush.bf16.msra.mxu0 0
  %429 = vmatpush.bf16.msra.mxu0 0
  %430 = vmatpush.bf16.msra.mxu0 0
  %431 = vmatpush.bf16.msra.mxu0 0
  %432 = vmatpush.bf16.msra.mxu0 0
  %433 = vmatpush.bf16.msra.mxu0 0
  %434 = vmatpush.bf16.msra.mxu0 0
  %435 = vmatpush.bf16.msra.mxu0 %v426
  %436 = vmatmul.bf16.gmra.mxu0 %v423
  %v437 = vpop.f32.mrf.mxu0
  %v438 = vadd.f32 0.0, %v437
  %v439 = vpop.f32.mrf.mxu0
  %440 = vdwg.mxu0
  %v441 = vpack.c.bf16 %v305, %v305
  %v442 = vpack.c.bf16 %v324, %v324
  %v443 = vpack.c.bf16 %v343, %v343
  %v444 = vpack.c.bf16 %v362, %v362
  %v445 = vpack.c.bf16 %v381, %v381
  %v446 = vpack.c.bf16 %v400, %v400
  %v447 = vpack.c.bf16 %v419, %v419
  %v448 = vpack.c.bf16 %v438, %v438
  %vm449 = vcmask 60416
  %450 = vst.msk [vmem:[%s3] sm:$0xf] %vm449, %v441
  %451 = vst.msk [vmem:[%s3 + $0x4] sm:$0xf] %vm449, %v442
  %452 = vst.msk [vmem:[%s3 + $0x8] sm:$0xf] %vm449, %v443
  %453 = vst.msk [vmem:[%s3 + $0xc] sm:$0xf] %vm449, %v444
  %454 = vst.msk [vmem:[%s3 + $0x10] sm:$0xf] %vm449, %v445
  %455 = vst.msk [vmem:[%s3 + $0x14] sm:$0xf] %vm449, %v446
  %456 = vst.msk [vmem:[%s3 + $0x18] sm:$0xf] %vm449, %v447
  %457 = vst.msk [vmem:[%s3 + $0x1c] sm:$0xf] %vm449, %v448
  // Predicated region
  $region14: #{spectrogram_clip_layer.4} parent=0 // pred_check
    _
  $region15: #{spectrogram_clip_layer.4} parent=0 // pred_check_branch
    %459 = sbr.rel (0) target = $region17
  $region16: #{spectrogram_clip_layer.4} parent=0 // pred_region
    _
  $region17: #{spectrogram_clip_layer.4} parent=0 // pred_fallthru
    _
  // Predicated region
  $region18: #{spectrogram_clip_layer.4} parent=0 // pred_check
    _
  $region19: #{spectrogram_clip_layer.4} parent=0 // pred_check_branch
    %461 = sbr.rel (0) target = $region21
  $region20: #{spectrogram_clip_layer.4} parent=0 // pred_region
    _
  $region21: #{spectrogram_clip_layer.4} parent=0 // pred_fallthru
    _

// kernel: spectrogram_clip_layer.3
$region0: #{spectrogram_clip_layer.3}
  #allocation0 [shape = 'u32[]', space=smem, size = 0x4, offset = 0x4, fixed_abs, tag = 'smem constant byte address 0x4 - core index']
  #allocation1 [shape = 'u32[72,128]{1,0:T(1,128)}', space=vmem, size = 0x9000, scoped, tag = 'internal scratch']
  %s0 = inlined_call_operand.hbm [shape: f32[16,32], index: 0, kind: input, shape index: {}]
  %s1 = inlined_call_operand.vmem [shape: f32[1,32], index: 1, kind: input, shape index: {}]
  %s2 = inlined_call_operand.vmem [shape: f32[1,32], index: 2, kind: input, shape index: {}]
  %s3 = inlined_call_operand.hbm [shape: bf16[32,96], index: 3, kind: input, shape index: {}]
  %s4 = inlined_call_operand.vmem [shape: f32[1,96], index: 4, kind: input, shape index: {}]
  %s5 = inlined_call_operand.vmem [shape: bf16[16,96], index: 5, kind: output, shape index: {}]
  %s6 = sld [smem:[#allocation0]]
  $region38: #{spectrogram_clip_layer.3} parent=0
    _
  %s8 = ssub.s32 1, %s6
  %s9 = scalar_select 0, %s8, %s6
  $region1: #{spectrogram_clip_layer.3} parent=0
    #allocation2 [shape = 'u8[8192]{0}', space=vmem, size = 0x2000, scoped, tag = 'input window, operand 0, single buffered']
    #allocation3 [shape = 's32[1]{0}', space=sflag, size = 0x4, scoped, tag = 'scoped memory for spectrogram_clip_layer.3']
    #allocation4 [shape = 'u8[8192]{0}', space=vmem, size = 0x2000, scoped, tag = 'input window, operand 3, single buffered']
    #allocation5 [shape = 's32[1]{0}', space=sflag, size = 0x4, scoped, tag = 'scoped memory for spectrogram_clip_layer.3']
    %10 = vsyncpa [#allocation3], 0
    %11 = vsyncpa [#allocation5], 0
    // Predicated region
    $region2: #{spectrogram_clip_layer.3} parent=1 // pred_check
      _
    $region3: #{spectrogram_clip_layer.3} parent=1 // pred_check_branch
      %13 = sbr.rel (0) target = $region5
    $region4: #{spectrogram_clip_layer.3} parent=1 // pred_region
      %15 = vsyncadd [#allocation3], 0
      %s16 = sshll.u32 %s0, 4
      %s17 = int_to_ptr.hbm [resolvable:$true] %s16
      %s18 = sshll.u32 [#allocation2], 4
      %s19 = int_to_ptr.vmem [resolvable:$true] %s18
      %24 = dma.hbm_to_vmem [thread:$0]  %s17, 256, %s19, [#allocation3], 128, 128, 8
    $region5: #{spectrogram_clip_layer.3} parent=1 // pred_fallthru
      _
    // Predicated region
    $region6: #{spectrogram_clip_layer.3} parent=1 // pred_check
      _
    $region7: #{spectrogram_clip_layer.3} parent=1 // pred_check_branch
      %26 = sbr.rel (0) target = $region9
    $region8: #{spectrogram_clip_layer.3} parent=1 // pred_region
      _
    $region9: #{spectrogram_clip_layer.3} parent=1 // pred_fallthru
      _
    // Predicated region
    $region10: #{spectrogram_clip_layer.3} parent=1 // pred_check
      _
    $region11: #{spectrogram_clip_layer.3} parent=1 // pred_check_branch
      %28 = sbr.rel (0) target = $region13
    $region12: #{spectrogram_clip_layer.3} parent=1 // pred_region
      _
    $region13: #{spectrogram_clip_layer.3} parent=1 // pred_fallthru
      _
    // Predicated region
    $region14: #{spectrogram_clip_layer.3} parent=1 // pred_check
      _
    $region15: #{spectrogram_clip_layer.3} parent=1 // pred_check_branch
      %30 = sbr.rel (0) target = $region17
    $region16: #{spectrogram_clip_layer.3} parent=1 // pred_region
      %32 = vsyncadd [#allocation5], 0
      %s33 = sshll.u32 %s3, 4
      %s34 = int_to_ptr.hbm [resolvable:$true] %s33
      %s35 = sshll.u32 [#allocation4], 4
      %s36 = int_to_ptr.vmem [resolvable:$true] %s35
      %41 = dma.hbm_to_vmem [thread:$0]  %s34, 256, %s36, [#allocation5], 64, 64, 4
    $region17: #{spectrogram_clip_layer.3} parent=1 // pred_fallthru
      _
    // Predicated region
    $region18: #{spectrogram_clip_layer.3} parent=1 // pred_check
      _
    $region19: #{spectrogram_clip_layer.3} parent=1 // pred_check_branch
      %43 = sbr.rel (0) target = $region21
    $region20: #{spectrogram_clip_layer.3} parent=1 // pred_region
      _
    $region21: #{spectrogram_clip_layer.3} parent=1 // pred_fallthru
      _
    // Predicated region
    $region22: #{spectrogram_clip_layer.3} parent=1 // pred_check
      _
    $region23: #{spectrogram_clip_layer.3} parent=1 // pred_check_branch
      %45 = sbr.rel (0) target = $region25
    $region24: #{spectrogram_clip_layer.3} parent=1 // pred_region
      %47 = dma.done [#allocation3], 256
    $region25: #{spectrogram_clip_layer.3} parent=1 // pred_fallthru
      _
    // Predicated region
    $region26: #{spectrogram_clip_layer.3} parent=1 // pred_check
      _
    $region27: #{spectrogram_clip_layer.3} parent=1 // pred_check_branch
      %49 = sbr.rel (0) target = $region29
    $region28: #{spectrogram_clip_layer.3} parent=1 // pred_region
      %51 = dma.done [#allocation5], 256
    $region29: #{spectrogram_clip_layer.3} parent=1 // pred_fallthru
      _
    %v53 = vld [vmem:[#allocation2] sm:$0xff]
    %v54 = vld [vmem:[#allocation2 + $0x8] sm:$0xff]
    %v55 = vld [vmem:[%s1] sm:$0x1]
    %v56 = vld [vmem:[%s2] sm:$0x1]
    %vm57 = vcmask 261120
    %v58 = vsel %vm57, %v53, 0.0
    %59 = vadd.xlane.f32.xlu0 %v58
    %v60 = vpop.xlane.xlu0 %59
    %v61 = vsel %vm57, %v54, 0.0
    %62 = vadd.xlane.f32.xlu0 %v61
    %v63 = vpop.xlane.xlu0 %62
    %v64 = vrcp.pop 32.0
    %v65 = vmul.f32 32.0, %v64
    %v66 = vsub.f32 1.0, %v65
    %v67 = vmul.f32 %v64, %v66
    %v68 = vadd.f32 %v64, %v67
    %vm69 = vweird.f32 %v64
    %v70 = vsel %vm69, %v64, %v68
    %v71 = vmul.f32 %v60, %v70
    %v72 = vmul.f32 %v63, %v70
    %v73 = vsub.f32 %v53, %v71
    %v74 = vsub.f32 %v54, %v72
    %v75 = vmul.f32 %v73, %v73
    %v76 = vmul.f32 %v74, %v74
    %v77 = vsel %vm57, %v75, 0.0
    %78 = vadd.xlane.f32.xlu0 %v77
    %v79 = vpop.xlane.xlu0 %78
    %v80 = vsel %vm57, %v76, 0.0
    %81 = vadd.xlane.f32.xlu0 %v80
    %v82 = vpop.xlane.xlu0 %81
    %v83 = vmul.f32 %v79, %v70
    %v84 = vmul.f32 %v82, %v70
    %v85 = vadd.f32 %v83, 1e-05
    %v86 = vadd.f32 %v84, 1e-05
    %v87 = vrsqrt.pop %v85
    %v88 = vmul.f32 %v87, %v85
    %v89 = vmul.f32 %v88, %v87
    %v90 = vmul.f32 0.5, %v89
    %v91 = vsub.f32 1.5, %v90
    %v92 = vmul.f32 %v87, %v91
    %vm93 = vweird.f32 %v85
    %vm94 = vweird.f32 %v87
    %vm95 = vmor %vm93, %vm94
    %v96 = vsel %vm95, %v87, %v92
    %v97 = vrsqrt.pop %v86
    %v98 = vmul.f32 %v97, %v86
    %v99 = vmul.f32 %v98, %v97
    %v100 = vmul.f32 0.5, %v99
    %v101 = vsub.f32 1.5, %v100
    %v102 = vmul.f32 %v97, %v101
    %vm103 = vweird.f32 %v86
    %vm104 = vweird.f32 %v97
    %vm105 = vmor %vm103, %vm104
    %v106 = vsel %vm105, %v97, %v102
    %v107 = vmul.f32 %v73, %v96
    %v108 = vmul.f32 %v74, %v106
    %v110 = vperm.slane %v55, 0
    %v112 = vmul.f32 %v107, %v110
    %v113 = vmul.f32 %v108, %v110
    %v115 = vperm.slane %v56, 0
    %v117 = vadd.f32 %v112, %v115
    %v118 = vadd.f32 %v113, %v115
    %v119 = vpack.c.bf16 %v118, %v117
    %v120 = vld [vmem:[#allocation4] sm:$0xf]
    %v121 = vld [vmem:[#allocation4 + $0x4] sm:$0xf]
    %v122 = vld [vmem:[#allocation4 + $0x8] sm:$0xf]
    %v123 = vld [vmem:[#allocation4 + $0xc] sm:$0xf]
    %v124 = vld [vmem:[%s4] sm:$0x1]
    %v126 = vperm.slane %v124, 0
    %v132 = vunpack.c.l.b16 %v120
    %v133 = vunpack.c.l.b16 %v121
    %v134 = vunpack.c.l.b16 %v122
    %v135 = vunpack.c.l.b16 %v123
    %v136 = vpack.c.b16 %v133, %v132
    %v137 = vpack.c.b16 %v135, %v134
    %v141 = vsel %vm57, %v119, 0
    %143 = vmatpush.bf16.msra.mxu0 0
    %144 = vmatpush.bf16.msra.mxu0 0
    %145 = vmatpush.bf16.msra.mxu0 0
    %146 = vmatpush.bf16.msra.mxu0 0
    %147 = vmatpush.bf16.msra.mxu0 0
    %148 = vmatpush.bf16.msra.mxu0 0
    %149 = vmatpush.bf16.msra.mxu0 %v137
    %150 = vmatpush.bf16.msra.mxu0 %v136
    %151 = vmatmul.bf16.gmra.mxu0 %v141
    %v152 = vpop.f32.mrf.mxu0
    %v153 = vadd.f32 %v126, %v152
    %v154 = vpop.f32.mrf.mxu0
    %v155 = vadd.f32 %v126, %v154
    %156 = vdwg.mxu0
    %v157 = vpack.c.bf16 %v153, %v153
    %v158 = vpack.c.bf16 %v155, %v155
    %vm159 = vcmask 781312
    %160 = vst.msk [vmem:[%s5] sm:$0xf] %vm159, %v157
    %161 = vst.msk [vmem:[%s5 + $0x4] sm:$0xf] %vm159, %v158
    // Predicated region
    $region30: #{spectrogram_clip_layer.3} parent=1 // pred_check
      _
    $region31: #{spectrogram_clip_layer.3} parent=1 // pred_check_branch
      %163 = sbr.rel (0) target = $region33
    $region32: #{spectrogram_clip_layer.3} parent=1 // pred_region
      _
    $region33: #{spectrogram_clip_layer.3} parent=1 // pred_fallthru
      _
    // Predicated region
    $region34: #{spectrogram_clip_layer.3} parent=1 // pred_check
      _
    $region35: #{spectrogram_clip_layer.3} parent=1 // pred_check_branch
      %165 = sbr.rel (0) target = $region37
    $region36: #{spectrogram_clip_layer.3} parent=1 // pred_region
      _
    $region37: #{spectrogram_clip_layer.3} parent=1 // pred_fallthru
      _
    %166 = vsyncpa [#allocation3], 1
    %167 = vsyncpa [#allocation5], 1

// kernel: spectrogram_clip_layer.5
$region0: #{spectrogram_clip_layer.5}
  #allocation0 [shape = 'u32[]', space=smem, size = 0x4, offset = 0x4, fixed_abs, tag = 'smem constant byte address 0x4 - core index']
  #allocation1 [shape = 'u32[72,128]{1,0:T(1,128)}', space=vmem, size = 0x9000, scoped, tag = 'internal scratch']
  %s0 = inlined_call_operand.vmem [shape: bf16[16,32], index: 0, kind: input, shape index: {}]
  %s1 = inlined_call_operand.vmem [shape: f32[16,32], index: 1, kind: input, shape index: {}]
  %s2 = inlined_call_operand.vmem [shape: bf16[32,32], index: 2, kind: input, shape index: {}]
  %s3 = inlined_call_operand.vmem [shape: f32[1,32], index: 3, kind: input, shape index: {}]
  %s4 = inlined_call_operand.vmem [shape: f32[1,32], index: 4, kind: input, shape index: {}]
  %s5 = inlined_call_operand.vmem [shape: f32[1,32], index: 5, kind: input, shape index: {}]
  %s6 = inlined_call_operand.vmem [shape: bf16[32,128], index: 6, kind: input, shape index: {}]
  %s7 = inlined_call_operand.vmem [shape: f32[1,128], index: 7, kind: input, shape index: {}]
  %s8 = inlined_call_operand.vmem [shape: bf16[128,32], index: 8, kind: input, shape index: {}]
  %s9 = inlined_call_operand.vmem [shape: f32[1,32], index: 9, kind: input, shape index: {}]
  %s10 = inlined_call_operand.hbm [shape: f32[16,32], index: 10, kind: output, shape index: {}]
  %s11 = sld [smem:[#allocation0]]
  $region50: #{spectrogram_clip_layer.5} parent=0
    _
  %s13 = ssub.s32 1, %s11
  %s14 = scalar_select 0, %s13, %s11
  $region1: #{spectrogram_clip_layer.5} parent=0
    #allocation2 [shape = 'u8[8192]{0}', space=vmem, size = 0x2000, scoped, tag = 'output window, operand 0, single buffered']
    #allocation3 [shape = 's32[1]{0}', space=sflag, size = 0x4, scoped, tag = 'scoped memory for spectrogram_clip_layer.5']
    %15 = vsyncpa [#allocation3], 0
    // Predicated region
    $region2: #{spectrogram_clip_layer.5} parent=1 // pred_check
      _
    $region3: #{spectrogram_clip_layer.5} parent=1 // pred_check_branch
      %17 = sbr.rel (0) target = $region5
    $region4: #{spectrogram_clip_layer.5} parent=1 // pred_region
      _
    $region5: #{spectrogram_clip_layer.5} parent=1 // pred_fallthru
      _
    // Predicated region
    $region6: #{spectrogram_clip_layer.5} parent=1 // pred_check
      _
    $region7: #{spectrogram_clip_layer.5} parent=1 // pred_check_branch
      %19 = sbr.rel (0) target = $region9
    $region8: #{spectrogram_clip_layer.5} parent=1 // pred_region
      _
    $region9: #{spectrogram_clip_layer.5} parent=1 // pred_fallthru
      _
    // Predicated region
    $region10: #{spectrogram_clip_layer.5} parent=1 // pred_check
      _
    $region11: #{spectrogram_clip_layer.5} parent=1 // pred_check_branch
      %21 = sbr.rel (0) target = $region13
    $region12: #{spectrogram_clip_layer.5} parent=1 // pred_region
      _
    $region13: #{spectrogram_clip_layer.5} parent=1 // pred_fallthru
      _
    // Predicated region
    $region14: #{spectrogram_clip_layer.5} parent=1 // pred_check
      _
    $region15: #{spectrogram_clip_layer.5} parent=1 // pred_check_branch
      %23 = sbr.rel (0) target = $region17
    $region16: #{spectrogram_clip_layer.5} parent=1 // pred_region
      _
    $region17: #{spectrogram_clip_layer.5} parent=1 // pred_fallthru
      _
    // Predicated region
    $region18: #{spectrogram_clip_layer.5} parent=1 // pred_check
      _
    $region19: #{spectrogram_clip_layer.5} parent=1 // pred_check_branch
      %25 = sbr.rel (0) target = $region21
    $region20: #{spectrogram_clip_layer.5} parent=1 // pred_region
      _
    $region21: #{spectrogram_clip_layer.5} parent=1 // pred_fallthru
      _
    // Predicated region
    $region22: #{spectrogram_clip_layer.5} parent=1 // pred_check
      _
    $region23: #{spectrogram_clip_layer.5} parent=1 // pred_check_branch
      %27 = sbr.rel (0) target = $region25
    $region24: #{spectrogram_clip_layer.5} parent=1 // pred_region
      _
    $region25: #{spectrogram_clip_layer.5} parent=1 // pred_fallthru
      _
    // Predicated region
    $region26: #{spectrogram_clip_layer.5} parent=1 // pred_check
      _
    $region27: #{spectrogram_clip_layer.5} parent=1 // pred_check_branch
      %29 = sbr.rel (0) target = $region29
    $region28: #{spectrogram_clip_layer.5} parent=1 // pred_region
      _
    $region29: #{spectrogram_clip_layer.5} parent=1 // pred_fallthru
      _
    // Predicated region
    $region30: #{spectrogram_clip_layer.5} parent=1 // pred_check
      _
    $region31: #{spectrogram_clip_layer.5} parent=1 // pred_check_branch
      %31 = sbr.rel (0) target = $region33
    $region32: #{spectrogram_clip_layer.5} parent=1 // pred_region
      _
    $region33: #{spectrogram_clip_layer.5} parent=1 // pred_fallthru
      _
    // Predicated region
    $region34: #{spectrogram_clip_layer.5} parent=1 // pred_check
      _
    $region35: #{spectrogram_clip_layer.5} parent=1 // pred_check_branch
      %33 = sbr.rel (0) target = $region37
    $region36: #{spectrogram_clip_layer.5} parent=1 // pred_region
      _
    $region37: #{spectrogram_clip_layer.5} parent=1 // pred_fallthru
      _
    // Predicated region
    $region38: #{spectrogram_clip_layer.5} parent=1 // pred_check
      _
    $region39: #{spectrogram_clip_layer.5} parent=1 // pred_check_branch
      %35 = sbr.rel (0) target = $region41
    $region40: #{spectrogram_clip_layer.5} parent=1 // pred_region
      _
    $region41: #{spectrogram_clip_layer.5} parent=1 // pred_fallthru
      _
    %v37 = vld [vmem:[%s0] sm:$0xf]
    %v38 = vld [vmem:[%s0 + $0x4] sm:$0xf]
    %v39 = vld [vmem:[%s1] sm:$0xff]
    %v40 = vld [vmem:[%s1 + $0x8] sm:$0xff]
    %v41 = vld [vmem:[%s2] sm:$0xf]
    %v42 = vld [vmem:[%s2 + $0x4] sm:$0xf]
    %v43 = vld [vmem:[%s2 + $0x8] sm:$0xf]
    %v44 = vld [vmem:[%s2 + $0xc] sm:$0xf]
    %v45 = vld [vmem:[%s3] sm:$0x1]
    %v47 = vperm.slane %v45, 0
    %v51 = vunpack.c.l.b16 %v37
    %v52 = vunpack.c.l.b16 %v38
    %v53 = vpack.c.b16 %v52, %v51
    %v58 = vunpack.c.l.b16 %v41
    %v59 = vunpack.c.l.b16 %v42
    %v60 = vunpack.c.l.b16 %v43
    %v61 = vunpack.c.l.b16 %v44
    %v62 = vpack.c.b16 %v59, %v58
    %v63 = vpack.c.b16 %v61, %v60
    %vm66 = vcmask 261120
    %v68 = vsel %vm66, %v53, 0
    %70 = vmatpush.bf16.msra.mxu0 0
    %71 = vmatpush.bf16.msra.mxu0 0
    %72 = vmatpush.bf16.msra.mxu0 0
    %73 = vmatpush.bf16.msra.mxu0 0
    %74 = vmatpush.bf16.msra.mxu0 0
    %75 = vmatpush.bf16.msra.mxu0 0
    %76 = vmatpush.bf16.msra.mxu0 %v63
    %77 = vmatpush.bf16.msra.mxu0 %v62
    %78 = vmatmul.bf16.gmra.mxu0 %v68
    %v79 = vpop.f32.mrf.mxu0
    %v80 = vadd.f32 %v47, %v79
    %v81 = vpop.f32.mrf.mxu0
    %v82 = vadd.f32 %v47, %v81
    %83 = vdwg.mxu0
    %v84 = vadd.f32 %v80, %v39
    %v85 = vadd.f32 %v82, %v40
    %v86 = vld [vmem:[%s4] sm:$0x1]
    %v87 = vld [vmem:[%s5] sm:$0x1]
    %v88 = vsel %vm66, %v84, 0.0
    %89 = vadd.xlane.f32.xlu0 %v88
    %v90 = vpop.xlane.xlu0 %89
    %v91 = vsel %vm66, %v85, 0.0
    %92 = vadd.xlane.f32.xlu0 %v91
    %v93 = vpop.xlane.xlu0 %92
    %v94 = vrcp.pop 32.0
    %v95 = vmul.f32 32.0, %v94
    %v96 = vsub.f32 1.0, %v95
    %v97 = vmul.f32 %v94, %v96
    %v98 = vadd.f32 %v94, %v97
    %vm99 = vweird.f32 %v94
    %v100 = vsel %vm99, %v94, %v98
    %v101 = vmul.f32 %v90, %v100
    %v102 = vmul.f32 %v93, %v100
    %v103 = vsub.f32 %v84, %v101
    %v104 = vsub.f32 %v85, %v102
    %v105 = vmul.f32 %v103, %v103
    %v106 = vmul.f32 %v104, %v104
    %v107 = vsel %vm66, %v105, 0.0
    %108 = vadd.xlane.f32.xlu0 %v107
    %v109 = vpop.xlane.xlu0 %108
    %v110 = vsel %vm66, %v106, 0.0
    %111 = vadd.xlane.f32.xlu0 %v110
    %v112 = vpop.xlane.xlu0 %111
    %v113 = vmul.f32 %v109, %v100
    %v114 = vmul.f32 %v112, %v100
    %v115 = vadd.f32 %v113, 1e-05
    %v116 = vadd.f32 %v114, 1e-05
    %v117 = vrsqrt.pop %v115
    %v118 = vmul.f32 %v117, %v115
    %v119 = vmul.f32 %v118, %v117
    %v120 = vmul.f32 0.5, %v119
    %v121 = vsub.f32 1.5, %v120
    %v122 = vmul.f32 %v117, %v121
    %vm123 = vweird.f32 %v115
    %vm124 = vweird.f32 %v117
    %vm125 = vmor %vm123, %vm124
    %v126 = vsel %vm125, %v117, %v122
    %v127 = vrsqrt.pop %v116
    %v128 = vmul.f32 %v127, %v116
    %v129 = vmul.f32 %v128, %v127
    %v130 = vmul.f32 0.5, %v129
    %v131 = vsub.f32 1.5, %v130
    %v132 = vmul.f32 %v127, %v131
    %vm133 = vweird.f32 %v116
    %vm134 = vweird.f32 %v127
    %vm135 = vmor %vm133, %vm134
    %v136 = vsel %vm135, %v127, %v132
    %v137 = vmul.f32 %v103, %v126
    %v138 = vmul.f32 %v104, %v136
    %v140 = vperm.slane %v86, 0
    %v142 = vmul.f32 %v137, %v140
    %v143 = vmul.f32 %v138, %v140
    %v145 = vperm.slane %v87, 0
    %v147 = vadd.f32 %v142, %v145
    %v148 = vadd.f32 %v143, %v145
    %v149 = vpack.c.bf16 %v148, %v147
    %v150 = vld [vmem:[%s6] sm:$0xf]
    %v151 = vld [vmem:[%s6 + $0x4] sm:$0xf]
    %v152 = vld [vmem:[%s6 + $0x8] sm:$0xf]
    %v153 = vld [vmem:[%s6 + $0xc] sm:$0xf]
    %v154 = vld [vmem:[%s7] sm:$0x1]
    %v156 = vperm.slane %v154, 0
    %v162 = vunpack.c.l.b16 %v150
    %v163 = vunpack.c.l.b16 %v151
    %v164 = vunpack.c.l.b16 %v152
    %v165 = vunpack.c.l.b16 %v153
    %v166 = vpack.c.b16 %v163, %v162
    %v167 = vpack.c.b16 %v165, %v164
    %v171 = vsel %vm66, %v149, 0
    %173 = vmatpush.bf16.msra.mxu0 0
    %174 = vmatpush.bf16.msra.mxu0 0
    %175 = vmatpush.bf16.msra.mxu0 0
    %176 = vmatpush.bf16.msra.mxu0 0
    %177 = vmatpush.bf16.msra.mxu0 0
    %178 = vmatpush.bf16.msra.mxu0 0
    %179 = vmatpush.bf16.msra.mxu0 %v167
    %180 = vmatpush.bf16.msra.mxu0 %v166
    %181 = vmatmul.bf16.gmra.mxu0 %v171
    %v182 = vpop.f32.mrf.mxu0
    %v183 = vadd.f32 %v156, %v182
    %v184 = vpop.f32.mrf.mxu0
    %v185 = vadd.f32 %v156, %v184
    %186 = vdwg.mxu0
    %v187 = vmul.f32 %v183, 1.702
    %v188 = vmul.f32 %v185, 1.702
    %v189 = vxor.u32 %v187, 2147483648
    %v190 = vxor.u32 %v188, 2147483648
    %v191 = vmul.f32 %v189, 1.442695
    %v192 = vpow.pop %v191
    %v193 = vmul.f32 %v190, 1.442695
    %v194 = vpow.pop %v193
    %v195 = vadd.f32 %v192, 1.0
    %v196 = vadd.f32 %v194, 1.0
    %v197 = vrcp.pop %v195
    %v198 = vmul.f32 %v195, %v197
    %v199 = vsub.f32 1.0, %v198
    %v200 = vmul.f32 %v197, %v199
    %v201 = vadd.f32 %v197, %v200
    %vm202 = vweird.f32 %v195
    %vm203 = vweird.f32 %v197
    %vm204 = vmor %vm202, %vm203
    %v205 = vsel %vm204, %v197, %v201
    %v206 = vand.u32 2147483647, %v195
    %vm207 = vcmp.eq.f32.partialorder %v206, 8.507059e+37
    %v208 = vand.u32 %v195, 2147483648
    %v209 = vor.u32 1.1754944e-38, %v208
    %v210 = vsel %vm207, %v209, %v205
    %v211 = vmul.f32 1.0, %v210
    %v212 = vrcp.pop %v196
    %v213 = vmul.f32 %v196, %v212
    %v214 = vsub.f32 1.0, %v213
    %v215 = vmul.f32 %v212, %v214
    %v216 = vadd.f32 %v212, %v215
    %vm217 = vweird.f32 %v196
    %vm218 = vweird.f32 %v212
    %vm219 = vmor %vm217, %vm218
    %v220 = vsel %vm219, %v212, %v216
    %v221 = vand.u32 2147483647, %v196
    %vm222 = vcmp.eq.f32.partialorder %v221, 8.507059e+37
    %v223 = vand.u32 %v196, 2147483648
    %v224 = vor.u32 1.1754944e-38, %v223
    %v225 = vsel %vm222, %v224, %v220
    %v226 = vmul.f32 1.0, %v225
    %v227 = vmul.f32 %v183, %v211
    %v228 = vmul.f32 %v185, %v226
    %v229 = vpack.c.bf16 %v228, %v227
    %v230 = vld [vmem:[%s8] sm:$0xf]
    %v231 = vld [vmem:[%s8 + $0x4] sm:$0xf]
    %v232 = vld [vmem:[%s8 + $0x8] sm:$0xf]
    %v233 = vld [vmem:[%s8 + $0xc] sm:$0xf]
    %v234 = vld [vmem:[%s8 + $0x10] sm:$0xf]
    %v235 = vld [vmem:[%s8 + $0x14] sm:$0xf]
    %v236 = vld [vmem:[%s8 + $0x18] sm:$0xf]
    %v237 = vld [vmem:[%s8 + $0x1c] sm:$0xf]
    %v238 = vld [vmem:[%s8 + $0x20] sm:$0xf]
    %v239 = vld [vmem:[%s8 + $0x24] sm:$0xf]
    %v240 = vld [vmem:[%s8 + $0x28] sm:$0xf]
    %v241 = vld [vmem:[%s8 + $0x2c] sm:$0xf]
    %v242 = vld [vmem:[%s8 + $0x30] sm:$0xf]
    %v243 = vld [vmem:[%s8 + $0x34] sm:$0xf]
    %v244 = vld [vmem:[%s8 + $0x38] sm:$0xf]
    %v245 = vld [vmem:[%s8 + $0x3c] sm:$0xf]
    %v246 = vld [vmem:[%s9] sm:$0x1]
    %v248 = vperm.slane %v246, 0
    %v266 = vunpack.c.l.b16 %v230
    %v267 = vunpack.c.l.b16 %v231
    %v268 = vunpack.c.l.b16 %v232
    %v269 = vunpack.c.l.b16 %v233
    %v270 = vunpack.c.l.b16 %v234
    %v271 = vunpack.c.l.b16 %v235
    %v272 = vunpack.c.l.b16 %v236
    %v273 = vunpack.c.l.b16 %v237
    %v274 = vunpack.c.l.b16 %v238
    %v275 = vunpack.c.l.b16 %v239
    %v276 = vunpack.c.l.b16 %v240
    %v277 = vunpack.c.l.b16 %v241
    %v278 = vunpack.c.l.b16 %v242
    %v279 = vunpack.c.l.b16 %v243
    %v280 = vunpack.c.l.b16 %v244
    %v281 = vunpack.c.l.b16 %v245
    %v282 = vpack.c.b16 %v267, %v266
    %v283 = vpack.c.b16 %v269, %v268
    %v284 = vpack.c.b16 %v271, %v270
    %v285 = vpack.c.b16 %v273, %v272
    %v286 = vpack.c.b16 %v275, %v274
    %v287 = vpack.c.b16 %v277, %v276
    %v288 = vpack.c.b16 %v279, %v278
    %v289 = vpack.c.b16 %v281, %v280
    %298 = vmatpush.bf16.msra.mxu0 %v289
    %299 = vmatpush.bf16.msra.mxu0 %v288
    %300 = vmatpush.bf16.msra.mxu0 %v287
    %301 = vmatpush.bf16.msra.mxu0 %v286
    %302 = vmatpush.bf16.msra.mxu0 %v285
    %303 = vmatpush.bf16.msra.mxu0 %v284
    %304 = vmatpush.bf16.msra.mxu0 %v283
    %305 = vmatpush.bf16.msra.mxu0 %v282
    %306 = vmatmul.bf16.gmra.mxu0 %v229
    %v307 = vpop.f32.mrf.mxu0
    %v308 = vadd.f32 %v248, %v307
    %v309 = vpop.f32.mrf.mxu0
    %v310 = vadd.f32 %v248, %v309
    %311 = vdwg.mxu0
    %v312 = vadd.f32 %v308, %v84
    %v313 = vadd.f32 %v310, %v85
    %314 = vst.msk [vmem:[#allocation2] sm:$0xff] %vm66, %v312
    %315 = vst.msk [vmem:[#allocation2 + $0x8] sm:$0xff] %vm66, %v313
    // Predicated region
    $region42: #{spectrogram_clip_layer.5} parent=1 // pred_check
      _
    $region43: #{spectrogram_clip_layer.5} parent=1 // pred_check_branch
      %317 = sbr.rel (0) target = $region45
    $region44: #{spectrogram_clip_layer.5} parent=1 // pred_region
      %319 = vsyncadd [#allocation3], 0
      %s320 = sshll.u32 [#allocation2], 4
      %s321 = int_to_ptr.vmem [resolvable:$true] %s320
      %s322 = sshll.u32 %s10, 4
      %s323 = int_to_ptr.hbm [resolvable:$true] %s322
      %328 = dma.vmem_to_hbm [thread:$0]  %s321, 256, %s323, [#allocation3], 128, 128, 8
    $region45: #{spectrogram_clip_layer.5} parent=1 // pred_fallthru
      _
    // Predicated region
    $region46: #{spectrogram_clip_layer.5} parent=1 // pred_check
      _
    $region47: #{spectrogram_clip_layer.5} parent=1 // pred_check_branch
      %330 = sbr.rel (0) target = $region49
    $region48: #{spectrogram_clip_layer.5} parent=1 // pred_region
      %332 = dma.done [#allocation3], 256
    $region49: #{spectrogram_clip_layer.5} parent=1 // pred_fallthru
      _
    %333 = vsyncpa [#allocation3], 1

</llo_original>
